<compile_context>
chip_gen: v7x
topology: tpu7x:2x2x1
jax: 0.10.0
libtpu: 0.0.40
codegen_flags: <defaults>
</compile_context>

<pallas_src>
import functools

import jax
import jax.numpy as jnp
from jax.experimental import pallas as pl
from jax.experimental.pallas import tpu as pltpu

# ----------------------------- "opt" config ---------------------------------
N_TIMESTEPS = 3
N_GRIDS     = 4          # n_grids
N_FEATURES  = 2          # n_features per grid
FEAT_GRID   = (4, 4, 4)  # feature-grid spatial shape (D, H, W)
N_DIMS      = 3
HIDDEN      = 32         # decoder hidden width (2 hidden layers)
DATA_MIN    = -1.0       # opt['data_min']  -> volume_min buffer
DATA_MAX    = 3.0        # opt['data_max']  -> volume_max buffer
N_POINTS    = 256
MAX_TILE    = 1024       # points per grid step once N outgrows one block


# ----------------------------- fused Pallas kernel ---------------------------
def _voxel_index_components(k, D, H, W):
    """Split flattened voxel index k (= z*H*W + y*W + x) into (kz, ky, kx)."""
    HW = H * W
    if (HW & (HW - 1)) == 0 and (W & (W - 1)) == 0:
        # power-of-two dims -> pure shift/mask (cheap, well-supported VPU ops)
        kz = k >> (HW.bit_length() - 1)
        ky = (k >> (W.bit_length() - 1)) & (H - 1)
        kx = k & (W - 1)
    else:
        kz = k // HW
        ky = (k // W) % H
        kx = k % W
    return kz, ky, kx


def fused_forward_kernel(xT_ref, m_ref, t_ref, c_ref, w1t_ref, w2t_ref, so_ref,
                         o_ref, *, n_grids, dims):
    """Affine transform + trilinear sample + decoder MLP + vmin/vmax epilogue.

    Lane-dense layout (points on the lane axis):
      xT : (3, NT)               query points, transposed
      m  : (3*G, 3), t: (3*G,1)  per-grid affine rows ordered [g0 xyz | g1 xyz | ...]
      c  : (G, HIDDEN, 64)       feature grids pre-contracted with decoder layer 0
      w1t: (HIDDEN, HIDDEN), w2t: (1, HIDDEN)
      so : (2,) in SMEM          [vmax - vmin, vmin]
      o  : (1, NT)
    """
    D, H, W = dims
    vox = D * H * W
    nt = xT_ref.shape[1]

    # --- per-grid affine transform: K=3 -> three VPU broadcast-FMAs (skip MXU) ---
    loc = (m_ref[:, 0:1] * xT_ref[0:1, :]
           + m_ref[:, 1:2] * xT_ref[1:2, :]
           + m_ref[:, 2:3] * xT_ref[2:3, :]
           + t_ref[...])                                   # (3*G, NT)

    # flattened voxel index components (constant along lanes)
    k = jax.lax.broadcasted_iota(jnp.int32, (vox, nt), 0)
    kz, ky, kx = _voxel_index_components(k, D, H, W)

    h_acc = None
    for g in range(n_grids):
        cx = loc[3 * g + 0:3 * g + 1, :]                   # (1, NT) -> W axis
        cy = loc[3 * g + 1:3 * g + 2, :]                   # (1, NT) -> H axis
        cz = loc[3 * g + 2:3 * g + 3, :]                   # (1, NT) -> D axis
        # align_corners=True index space
        ix = (cx + 1.0) * (0.5 * (W - 1))
        iy = (cy + 1.0) * (0.5 * (H - 1))
        iz = (cz + 1.0) * (0.5 * (D - 1))
        fx = jnp.floor(ix)
        fy = jnp.floor(iy)
        fz = jnp.floor(iz)
        wx1 = ix - fx
        wy1 = iy - fy
        wz1 = iz - fz
        x0i = fx.astype(jnp.int32)
        y0i = fy.astype(jnp.int32)
        z0i = fz.astype(jnp.int32)
        # per-axis one-hot-weighted selectors; out-of-range corner indices never
        # match the iota -> exactly reproduces zeros padding
        sx = jnp.where(kx == x0i, 1.0 - wx1, 0.0) + jnp.where(kx == x0i + 1, wx1, 0.0)
        sy = jnp.where(ky == y0i, 1.0 - wy1, 0.0) + jnp.where(ky == y0i + 1, wy1, 0.0)
        sz = jnp.where(kz == z0i, 1.0 - wz1, 0.0) + jnp.where(kz == z0i + 1, wz1, 0.0)
        w64 = sz * sy * sx                                 # (vox, NT) trilinear weights
        part = jnp.dot(c_ref[g], w64,
                       preferred_element_type=jnp.float32)  # (HIDDEN, NT)
        h_acc = part if h_acc is None else h_acc + part

    # decoder (layer 0 already folded into c): relu -> linear -> relu -> linear
    h = jnp.maximum(h_acc, 0.0)
    h = jnp.maximum(jnp.dot(w1t_ref[...], h, preferred_element_type=jnp.float32), 0.0)
    y = jnp.dot(w2t_ref[...], h, preferred_element_type=jnp.float32)       # (1, NT)

    # TVAMGSRN.forward epilogue: y * (vmax - vmin) + vmin   (SMEM scalars)
    o_ref[...] = y * so_ref[0] + so_ref[1]


# ----------------------------- plain JAX glue --------------------------------
def quat_to_rotmat(q):
    n = jnp.linalg.norm(q, axis=-1, keepdims=True)
    q = q / jnp.maximum(n, 1e-12)
    w, x, y, z = q[:, 0], q[:, 1], q[:, 2], q[:, 3]
    return jnp.stack(
        [
            1 - 2 * (y * y + z * z), 2 * (x * y - w * z), 2 * (x * z + w * y),
            2 * (x * y + w * z), 1 - 2 * (x * x + z * z), 2 * (y * z - w * x),
            2 * (x * z - w * y), 2 * (y * z + w * x), 1 - 2 * (x * x + y * y),
        ],
        axis=-1,
    ).reshape(-1, 3, 3)


def tvamgsrn_forward(models, vmin, vmax, x, t=0):
    """TVAMGSRN.forward: y = models[t](x); y * (vmax - vmin) + vmin."""
    p = models[t]
    N = x.shape[0]
    G, F = N_GRIDS, N_FEATURES
    D, H, W = FEAT_GRID
    vox = D * H * W
    Hd = HIDDEN

    # Tiny (KiB-scale) trace-time/XLA parameter prep; all heavy work is in-kernel.
    R = quat_to_rotmat(p["rotations"])
    A = jnp.exp(p["_scales"])[:, :, None] * R              # (G,3,3): local = S R x + t
    M = A.reshape(3 * G, 3)
    tb = p["translations"].reshape(3 * G, 1)
    grid_flat = p["feature_grids"].reshape(G, F, vox)
    # fold decoder layer 0 (bias-free) into the grids: C[g,h,k] = sum_f w0[gF+f,h]*grid[g,f,k]
    C = jnp.einsum("gfh,gfk->ghk", p["w0"].reshape(G, F, Hd), grid_flat)
    w1t = p["w1"].T
    w2t = p["w2"].T
    so = jnp.concatenate([vmax - vmin, vmin]).astype(jnp.float32)           # (2,)
    xT = x.T                                                                # (3, N)

    n_tile = N if N <= MAX_TILE else MAX_TILE
    assert N % n_tile == 0, "N must be a multiple of the point tile"

    flops = int(N * (6 * 3 * G                      # affine FMAs
                     + 14 * G * vox                 # trilinear weight build (VPU)
                     + 2 * G * Hd * vox             # interpolation matmuls
                     + 2 * Hd * Hd + 2 * Hd + 2))   # decoder + epilogue
    bytes_accessed = 4 * int(3 * N + N + 2 + 3 * G * 4
                             + G * Hd * vox + Hd * Hd + Hd)

    out = pl.pallas_call(
        functools.partial(fused_forward_kernel, n_grids=G, dims=FEAT_GRID),
        out_shape=jax.ShapeDtypeStruct((1, N), jnp.float32),
        grid=(N // n_tile,),
        in_specs=[
            pl.BlockSpec((3, n_tile), lambda i: (0, i)),
            pl.BlockSpec((3 * G, 3), lambda i: (0, 0)),
            pl.BlockSpec((3 * G, 1), lambda i: (0, 0)),
            pl.BlockSpec((G, Hd, vox), lambda i: (0, 0, 0)),
            pl.BlockSpec((Hd, Hd), lambda i: (0, 0)),
            pl.BlockSpec((1, Hd), lambda i: (0, 0)),
            pl.BlockSpec(memory_space=pltpu.MemorySpace.SMEM),   # [scale, offset]
        ],
        out_specs=pl.BlockSpec((1, n_tile), lambda i: (0, i)),
        compiler_params=pltpu.CompilerParams(dimension_semantics=("parallel",)),
        cost_estimate=pl.CostEstimate(flops=flops, transcendentals=0,
                                      bytes_accessed=bytes_accessed),
    )(xT, M, tb, C, w1t, w2t, so)
    return out.reshape(N, 1)


# ----------------------------- plain-JAX reference ---------------------------
def trilinear_sample_one_grid(grid, coords):
    """torch.grid_sample-style trilinear sample (align_corners=True, zeros pad)."""
    F, D, H, W = grid.shape
    cx, cy, cz = coords[:, 0], coords[:, 1], coords[:, 2]
    ix = (cx + 1.0) * 0.5 * (W - 1)
    iy = (cy + 1.0) * 0.5 * (H - 1)
    iz = (cz + 1.0) * 0.5 * (D - 1)
    x0, y0, z0 = jnp.floor(ix), jnp.floor(iy), jnp.floor(iz)
    x1, y1, z1 = x0 + 1.0, y0 + 1.0, z0 + 1.0
    wx1, wy1, wz1 = ix - x0, iy - y0, iz - z0
    wx0, wy0, wz0 = 1.0 - wx1, 1.0 - wy1, 1.0 - wz1

    def corner(zi, yi, xi, w):
        inb = ((xi >= 0) & (xi <= W - 1) & (yi >= 0) & (yi <= H - 1)
               & (zi >= 0) & (zi <= D - 1))
        xi_c = jnp.clip(xi, 0, W - 1).astype(jnp.int32)
        yi_c = jnp.clip(yi, 0, H - 1).astype(jnp.int32)
        zi_c = jnp.clip(zi, 0, D - 1).astype(jnp.int32)
        vals = grid[:, zi_c, yi_c, xi_c]                  # (F, N)
        return jnp.where(inb[None, :], vals, 0.0) * w[None, :]

    out = (corner(z0, y0, x0, wz0 * wy0 * wx0) + corner(z0, y0, x1, wz0 * wy0 * wx1)
           + corner(z0, y1, x0, wz0 * wy1 * wx0) + corner(z0, y1, x1, wz0 * wy1 * wx1)
           + corner(z1, y0, x0, wz1 * wy0 * wx0) + corner(z1, y0, x1, wz1 * wy0 * wx1)
           + corner(z1, y1, x0, wz1 * wy1 * wx0) + corner(z1, y1, x1, wz1 * wy1 * wx1))
    return out.T                                          # (N, F)


def reference_forward(p, vmin, vmax, x):
    R = quat_to_rotmat(p["rotations"])
    A = jnp.exp(p["_scales"])[:, :, None] * R
    local = jnp.einsum("gkd,nd->gnk", A, x) + p["translations"][:, None, :]
    feats = jax.vmap(trilinear_sample_one_grid)(p["feature_grids"], local)   # (G,N,F)
    feats = jnp.transpose(feats, (1, 0, 2)).reshape(x.shape[0], -1)          # (N,G*F)
    h = jax.nn.relu(feats @ p["w0"])
    h = jax.nn.relu(h @ p["w1"])
    y = h @ p["w2"]
    return y * (vmax - vmin) + vmin


# ----------------------------- deterministic init ----------------------------
def init_amgsrn(key):
    ks = jax.random.split(key, 7)
    D, H, W = FEAT_GRID
    gf = N_GRIDS * N_FEATURES
    return dict(
        feature_grids=jax.random.uniform(
            ks[0], (N_GRIDS, N_FEATURES, D, H, W), jnp.float32, -0.1, 0.1),
        rotations=jnp.tile(jnp.array([1.0, 0.0, 0.0, 0.0], jnp.float32), (N_GRIDS, 1))
        + 0.05 * jax.random.normal(ks[1], (N_GRIDS, 4), jnp.float32),
        _scales=0.1 * jax.random.normal(ks[2], (N_GRIDS, 3), jnp.float32),
        translations=0.1 * jax.random.normal(ks[3], (N_GRIDS, 3), jnp.float32),
        w0=jax.random.normal(ks[4], (gf, HIDDEN), jnp.float32) / jnp.sqrt(gf),
        w1=jax.random.normal(ks[5], (HIDDEN, HIDDEN), jnp.float32) / jnp.sqrt(HIDDEN),
        w2=jax.random.normal(ks[6], (HIDDEN, 1), jnp.float32) / jnp.sqrt(HIDDEN),
    )


if __name__ == "__main__":
    key = jax.random.PRNGKey(0)
    k_models, k_x = jax.random.split(key)
    models = [init_amgsrn(k) for k in jax.random.split(k_models, N_TIMESTEPS)]
    x = jax.random.uniform(k_x, (N_POINTS, N_DIMS), jnp.float32, -1.0, 1.0)

    vmin = jnp.full((1,), DATA_MIN, jnp.float32)   # volume_min buffer
    vmax = jnp.full((1,), DATA_MAX, jnp.float32)   # volume_max buffer

    fwd = jax.jit(functools.partial(tvamgsrn_forward, t=0))
    y = jax.block_until_ready(fwd(models, vmin, vmax, x))

    assert y.shape == (N_POINTS, 1) and y.dtype == jnp.float32
    assert bool(jnp.all(jnp.isfinite(y)))

    # correctness vs the plain-JAX (original per-stage) formulation
    y_ref = reference_forward(models[0], vmin, vmax, x)
    assert bool(jnp.allclose(y, y_ref, atol=1e-3, rtol=1e-3)), (
        "max abs err = %f" % float(jnp.max(jnp.abs(y - y_ref))))
    print("KERNEL_OK")
</pallas_src>

<mosaic_0001>
module attributes {stable_mosaic.version = 11 : i64} {
  func.func @fused_forward_kernel(%arg0: i32, %arg1: memref<3x256xf32, #tpu.memory_space<vmem>>, %arg2: memref<12x3xf32, #tpu.memory_space<vmem>>, %arg3: memref<12x1xf32, #tpu.memory_space<vmem>>, %arg4: memref<4x32x64xf32, #tpu.memory_space<vmem>>, %arg5: memref<32x32xf32, #tpu.memory_space<vmem>>, %arg6: memref<1x32xf32, #tpu.memory_space<vmem>>, %arg7: memref<2xf32, #tpu.memory_space<smem>>, %arg8: memref<1x256xf32, #tpu.memory_space<vmem>>) attributes {dimension_semantics = [#tpu.dimension_semantics<parallel>], iteration_bounds = array<i64: 1>, scalar_prefetch = 0 : i64, scratch_operands = 0 : i64, tpu.core_type = #tpu.core_type<tc>, window_params = [{transform_indices = @transform_0, window_bounds = array<i64: 3, 256>}, {pipeline_mode = #tpu.pipeline_mode<synchronous>, transform_indices = @transform_1, window_bounds = array<i64: 12, 3>}, {pipeline_mode = #tpu.pipeline_mode<synchronous>, transform_indices = @transform_2, window_bounds = array<i64: 12, 1>}, {pipeline_mode = #tpu.pipeline_mode<synchronous>, transform_indices = @transform_3, window_bounds = array<i64: 4, 32, 64>}, {pipeline_mode = #tpu.pipeline_mode<synchronous>, transform_indices = @transform_4, window_bounds = array<i64: 32, 32>}, {pipeline_mode = #tpu.pipeline_mode<synchronous>, transform_indices = @transform_5, window_bounds = array<i64: 1, 32>}, {transform_indices = @transform_6, window_bounds = array<i64: 2>}, {transform_indices = @transform_7, window_bounds = array<i64: 1, 256>}]} {
    %c0 = arith.constant 0 : index
    %c0_0 = arith.constant 0 : index
    %0 = vector.load %arg2[%c0, %c0_0] : memref<12x3xf32, #tpu.memory_space<vmem>>, vector<12x1xf32>
    %c0_1 = arith.constant 0 : index
    %c0_2 = arith.constant 0 : index
    %1 = vector.load %arg1[%c0_1, %c0_2] : memref<3x256xf32, #tpu.memory_space<vmem>>, vector<1x256xf32>
    %2 = vector.broadcast %0 : vector<12x1xf32> to vector<12x256xf32>
    %3 = vector.broadcast %1 : vector<1x256xf32> to vector<12x256xf32>
    %4 = arith.mulf %2, %3 : vector<12x256xf32>
    %c0_3 = arith.constant 0 : index
    %c1 = arith.constant 1 : index
    %5 = vector.load %arg2[%c0_3, %c1] : memref<12x3xf32, #tpu.memory_space<vmem>>, vector<12x1xf32>
    %c1_4 = arith.constant 1 : index
    %c0_5 = arith.constant 0 : index
    %6 = vector.load %arg1[%c1_4, %c0_5] : memref<3x256xf32, #tpu.memory_space<vmem>>, vector<1x256xf32>
    %7 = vector.broadcast %5 : vector<12x1xf32> to vector<12x256xf32>
    %8 = vector.broadcast %6 : vector<1x256xf32> to vector<12x256xf32>
    %9 = arith.mulf %7, %8 : vector<12x256xf32>
    %10 = arith.addf %4, %9 : vector<12x256xf32>
    %c0_6 = arith.constant 0 : index
    %c2 = arith.constant 2 : index
    %11 = vector.load %arg2[%c0_6, %c2] : memref<12x3xf32, #tpu.memory_space<vmem>>, vector<12x1xf32>
    %c2_7 = arith.constant 2 : index
    %c0_8 = arith.constant 0 : index
    %12 = vector.load %arg1[%c2_7, %c0_8] : memref<3x256xf32, #tpu.memory_space<vmem>>, vector<1x256xf32>
    %13 = vector.broadcast %11 : vector<12x1xf32> to vector<12x256xf32>
    %14 = vector.broadcast %12 : vector<1x256xf32> to vector<12x256xf32>
    %15 = arith.mulf %13, %14 : vector<12x256xf32>
    %16 = arith.addf %10, %15 : vector<12x256xf32>
    %c0_9 = arith.constant 0 : index
    %c0_10 = arith.constant 0 : index
    %17 = vector.load %arg3[%c0_9, %c0_10] : memref<12x1xf32, #tpu.memory_space<vmem>>, vector<12x1xf32>
    %18 = vector.broadcast %17 : vector<12x1xf32> to vector<12x256xf32>
    %19 = arith.addf %16, %18 : vector<12x256xf32>
    %20 = tpu.iota {dimensions = array<i32: 0>} : vector<64x256xi32>
    %c4_i32 = arith.constant 4 : i32
    %21 = vector.broadcast %c4_i32 : i32 to vector<64x256xi32>
    %22 = arith.shrsi %20, %21 : vector<64x256xi32>
    %c2_i32 = arith.constant 2 : i32
    %23 = vector.broadcast %c2_i32 : i32 to vector<64x256xi32>
    %24 = arith.shrsi %20, %23 : vector<64x256xi32>
    %c3_i32 = arith.constant 3 : i32
    %25 = vector.broadcast %c3_i32 : i32 to vector<64x256xi32>
    %26 = arith.andi %24, %25 : vector<64x256xi32>
    %c3_i32_11 = arith.constant 3 : i32
    %27 = vector.broadcast %c3_i32_11 : i32 to vector<64x256xi32>
    %28 = arith.andi %20, %27 : vector<64x256xi32>
    %29 = vector.extract_strided_slice %19 {offsets = [0, 0], sizes = [1, 256], strides = [1, 1]} : vector<12x256xf32> to vector<1x256xf32>
    %30 = vector.extract_strided_slice %19 {offsets = [1, 0], sizes = [1, 256], strides = [1, 1]} : vector<12x256xf32> to vector<1x256xf32>
    %31 = vector.extract_strided_slice %19 {offsets = [2, 0], sizes = [1, 256], strides = [1, 1]} : vector<12x256xf32> to vector<1x256xf32>
    %cst = arith.constant 1.000000e+00 : f32
    %32 = vector.broadcast %cst : f32 to vector<1x256xf32>
    %33 = arith.addf %29, %32 : vector<1x256xf32>
    %cst_12 = arith.constant 1.500000e+00 : f32
    %34 = vector.broadcast %cst_12 : f32 to vector<1x256xf32>
    %35 = arith.mulf %33, %34 : vector<1x256xf32>
    %cst_13 = arith.constant 1.000000e+00 : f32
    %36 = vector.broadcast %cst_13 : f32 to vector<1x256xf32>
    %37 = arith.addf %30, %36 : vector<1x256xf32>
    %cst_14 = arith.constant 1.500000e+00 : f32
    %38 = vector.broadcast %cst_14 : f32 to vector<1x256xf32>
    %39 = arith.mulf %37, %38 : vector<1x256xf32>
    %cst_15 = arith.constant 1.000000e+00 : f32
    %40 = vector.broadcast %cst_15 : f32 to vector<1x256xf32>
    %41 = arith.addf %31, %40 : vector<1x256xf32>
    %cst_16 = arith.constant 1.500000e+00 : f32
    %42 = vector.broadcast %cst_16 : f32 to vector<1x256xf32>
    %43 = arith.mulf %41, %42 : vector<1x256xf32>
    %44 = math.floor %35 : vector<1x256xf32>
    %45 = math.floor %39 : vector<1x256xf32>
    %46 = math.floor %43 : vector<1x256xf32>
    %47 = arith.subf %35, %44 : vector<1x256xf32>
    %48 = arith.subf %39, %45 : vector<1x256xf32>
    %49 = arith.subf %43, %46 : vector<1x256xf32>
    %50 = arith.fptosi %44 : vector<1x256xf32> to vector<1x256xi32>
    %51 = arith.fptosi %45 : vector<1x256xf32> to vector<1x256xi32>
    %52 = arith.fptosi %46 : vector<1x256xf32> to vector<1x256xi32>
    %53 = vector.broadcast %50 : vector<1x256xi32> to vector<64x256xi32>
    %54 = arith.cmpi eq, %28, %53 : vector<64x256xi32>
    %cst_17 = arith.constant 1.000000e+00 : f32
    %55 = vector.broadcast %cst_17 : f32 to vector<1x256xf32>
    %56 = arith.subf %55, %47 : vector<1x256xf32>
    %cst_18 = arith.constant 0.000000e+00 : f32
    %57 = vector.shape_cast %56 : vector<1x256xf32> to vector<1x256xf32>
    %58 = vector.broadcast %57 : vector<1x256xf32> to vector<64x256xf32>
    %59 = vector.broadcast %cst_18 : f32 to vector<64x256xf32>
    %60 = arith.select %54, %58, %59 : vector<64x256xi1>, vector<64x256xf32>
    %c1_i32 = arith.constant 1 : i32
    %61 = vector.broadcast %c1_i32 : i32 to vector<1x256xi32>
    %62 = arith.addi %50, %61 : vector<1x256xi32>
    %63 = vector.broadcast %62 : vector<1x256xi32> to vector<64x256xi32>
    %64 = arith.cmpi eq, %28, %63 : vector<64x256xi32>
    %cst_19 = arith.constant 0.000000e+00 : f32
    %65 = vector.shape_cast %47 : vector<1x256xf32> to vector<1x256xf32>
    %66 = vector.broadcast %65 : vector<1x256xf32> to vector<64x256xf32>
    %67 = vector.broadcast %cst_19 : f32 to vector<64x256xf32>
    %68 = arith.select %64, %66, %67 : vector<64x256xi1>, vector<64x256xf32>
    %69 = arith.addf %60, %68 : vector<64x256xf32>
    %70 = vector.broadcast %51 : vector<1x256xi32> to vector<64x256xi32>
    %71 = arith.cmpi eq, %26, %70 : vector<64x256xi32>
    %cst_20 = arith.constant 1.000000e+00 : f32
    %72 = vector.broadcast %cst_20 : f32 to vector<1x256xf32>
    %73 = arith.subf %72, %48 : vector<1x256xf32>
    %cst_21 = arith.constant 0.000000e+00 : f32
    %74 = vector.shape_cast %73 : vector<1x256xf32> to vector<1x256xf32>
    %75 = vector.broadcast %74 : vector<1x256xf32> to vector<64x256xf32>
    %76 = vector.broadcast %cst_21 : f32 to vector<64x256xf32>
    %77 = arith.select %71, %75, %76 : vector<64x256xi1>, vector<64x256xf32>
    %c1_i32_22 = arith.constant 1 : i32
    %78 = vector.broadcast %c1_i32_22 : i32 to vector<1x256xi32>
    %79 = arith.addi %51, %78 : vector<1x256xi32>
    %80 = vector.broadcast %79 : vector<1x256xi32> to vector<64x256xi32>
    %81 = arith.cmpi eq, %26, %80 : vector<64x256xi32>
    %cst_23 = arith.constant 0.000000e+00 : f32
    %82 = vector.shape_cast %48 : vector<1x256xf32> to vector<1x256xf32>
    %83 = vector.broadcast %82 : vector<1x256xf32> to vector<64x256xf32>
    %84 = vector.broadcast %cst_23 : f32 to vector<64x256xf32>
    %85 = arith.select %81, %83, %84 : vector<64x256xi1>, vector<64x256xf32>
    %86 = arith.addf %77, %85 : vector<64x256xf32>
    %87 = vector.broadcast %52 : vector<1x256xi32> to vector<64x256xi32>
    %88 = arith.cmpi eq, %22, %87 : vector<64x256xi32>
    %cst_24 = arith.constant 1.000000e+00 : f32
    %89 = vector.broadcast %cst_24 : f32 to vector<1x256xf32>
    %90 = arith.subf %89, %49 : vector<1x256xf32>
    %cst_25 = arith.constant 0.000000e+00 : f32
    %91 = vector.shape_cast %90 : vector<1x256xf32> to vector<1x256xf32>
    %92 = vector.broadcast %91 : vector<1x256xf32> to vector<64x256xf32>
    %93 = vector.broadcast %cst_25 : f32 to vector<64x256xf32>
    %94 = arith.select %88, %92, %93 : vector<64x256xi1>, vector<64x256xf32>
    %c1_i32_26 = arith.constant 1 : i32
    %95 = vector.broadcast %c1_i32_26 : i32 to vector<1x256xi32>
    %96 = arith.addi %52, %95 : vector<1x256xi32>
    %97 = vector.broadcast %96 : vector<1x256xi32> to vector<64x256xi32>
    %98 = arith.cmpi eq, %22, %97 : vector<64x256xi32>
    %cst_27 = arith.constant 0.000000e+00 : f32
    %99 = vector.shape_cast %49 : vector<1x256xf32> to vector<1x256xf32>
    %100 = vector.broadcast %99 : vector<1x256xf32> to vector<64x256xf32>
    %101 = vector.broadcast %cst_27 : f32 to vector<64x256xf32>
    %102 = arith.select %98, %100, %101 : vector<64x256xi1>, vector<64x256xf32>
    %103 = arith.addf %94, %102 : vector<64x256xf32>
    %104 = arith.mulf %103, %86 : vector<64x256xf32>
    %105 = arith.mulf %104, %69 : vector<64x256xf32>
    %c0_28 = arith.constant 0 : index
    %c0_29 = arith.constant 0 : index
    %c0_30 = arith.constant 0 : index
    %106 = vector.load %arg4[%c0_28, %c0_29, %c0_30] : memref<4x32x64xf32, #tpu.memory_space<vmem>>, vector<1x32x64xf32>
    %107 = vector.shape_cast %106 : vector<1x32x64xf32> to vector<32x64xf32>
    %cst_31 = arith.constant dense<0.000000e+00> : vector<32x256xf32>
    %108 = tpu.matmul %107, %105, %cst_31 {dimension_numbers = #tpu.dot_dimension_numbers<[1], [0], [0], [1], [0, 0, 1, 1], [], []>} : vector<32x64xf32>, vector<64x256xf32>, vector<32x256xf32> -> vector<32x256xf32>
    %109 = vector.extract_strided_slice %19 {offsets = [3, 0], sizes = [1, 256], strides = [1, 1]} : vector<12x256xf32> to vector<1x256xf32>
    %110 = vector.extract_strided_slice %19 {offsets = [4, 0], sizes = [1, 256], strides = [1, 1]} : vector<12x256xf32> to vector<1x256xf32>
    %111 = vector.extract_strided_slice %19 {offsets = [5, 0], sizes = [1, 256], strides = [1, 1]} : vector<12x256xf32> to vector<1x256xf32>
    %cst_32 = arith.constant 1.000000e+00 : f32
    %112 = vector.broadcast %cst_32 : f32 to vector<1x256xf32>
    %113 = arith.addf %109, %112 : vector<1x256xf32>
    %cst_33 = arith.constant 1.500000e+00 : f32
    %114 = vector.broadcast %cst_33 : f32 to vector<1x256xf32>
    %115 = arith.mulf %113, %114 : vector<1x256xf32>
    %cst_34 = arith.constant 1.000000e+00 : f32
    %116 = vector.broadcast %cst_34 : f32 to vector<1x256xf32>
    %117 = arith.addf %110, %116 : vector<1x256xf32>
    %cst_35 = arith.constant 1.500000e+00 : f32
    %118 = vector.broadcast %cst_35 : f32 to vector<1x256xf32>
    %119 = arith.mulf %117, %118 : vector<1x256xf32>
    %cst_36 = arith.constant 1.000000e+00 : f32
    %120 = vector.broadcast %cst_36 : f32 to vector<1x256xf32>
    %121 = arith.addf %111, %120 : vector<1x256xf32>
    %cst_37 = arith.constant 1.500000e+00 : f32
    %122 = vector.broadcast %cst_37 : f32 to vector<1x256xf32>
    %123 = arith.mulf %121, %122 : vector<1x256xf32>
    %124 = math.floor %115 : vector<1x256xf32>
    %125 = math.floor %119 : vector<1x256xf32>
    %126 = math.floor %123 : vector<1x256xf32>
    %127 = arith.subf %115, %124 : vector<1x256xf32>
    %128 = arith.subf %119, %125 : vector<1x256xf32>
    %129 = arith.subf %123, %126 : vector<1x256xf32>
    %130 = arith.fptosi %124 : vector<1x256xf32> to vector<1x256xi32>
    %131 = arith.fptosi %125 : vector<1x256xf32> to vector<1x256xi32>
    %132 = arith.fptosi %126 : vector<1x256xf32> to vector<1x256xi32>
    %133 = vector.broadcast %130 : vector<1x256xi32> to vector<64x256xi32>
    %134 = arith.cmpi eq, %28, %133 : vector<64x256xi32>
    %cst_38 = arith.constant 1.000000e+00 : f32
    %135 = vector.broadcast %cst_38 : f32 to vector<1x256xf32>
    %136 = arith.subf %135, %127 : vector<1x256xf32>
    %cst_39 = arith.constant 0.000000e+00 : f32
    %137 = vector.shape_cast %136 : vector<1x256xf32> to vector<1x256xf32>
    %138 = vector.broadcast %137 : vector<1x256xf32> to vector<64x256xf32>
    %139 = vector.broadcast %cst_39 : f32 to vector<64x256xf32>
    %140 = arith.select %134, %138, %139 : vector<64x256xi1>, vector<64x256xf32>
    %c1_i32_40 = arith.constant 1 : i32
    %141 = vector.broadcast %c1_i32_40 : i32 to vector<1x256xi32>
    %142 = arith.addi %130, %141 : vector<1x256xi32>
    %143 = vector.broadcast %142 : vector<1x256xi32> to vector<64x256xi32>
    %144 = arith.cmpi eq, %28, %143 : vector<64x256xi32>
    %cst_41 = arith.constant 0.000000e+00 : f32
    %145 = vector.shape_cast %127 : vector<1x256xf32> to vector<1x256xf32>
    %146 = vector.broadcast %145 : vector<1x256xf32> to vector<64x256xf32>
    %147 = vector.broadcast %cst_41 : f32 to vector<64x256xf32>
    %148 = arith.select %144, %146, %147 : vector<64x256xi1>, vector<64x256xf32>
    %149 = arith.addf %140, %148 : vector<64x256xf32>
    %150 = vector.broadcast %131 : vector<1x256xi32> to vector<64x256xi32>
    %151 = arith.cmpi eq, %26, %150 : vector<64x256xi32>
    %cst_42 = arith.constant 1.000000e+00 : f32
    %152 = vector.broadcast %cst_42 : f32 to vector<1x256xf32>
    %153 = arith.subf %152, %128 : vector<1x256xf32>
    %cst_43 = arith.constant 0.000000e+00 : f32
    %154 = vector.shape_cast %153 : vector<1x256xf32> to vector<1x256xf32>
    %155 = vector.broadcast %154 : vector<1x256xf32> to vector<64x256xf32>
    %156 = vector.broadcast %cst_43 : f32 to vector<64x256xf32>
    %157 = arith.select %151, %155, %156 : vector<64x256xi1>, vector<64x256xf32>
    %c1_i32_44 = arith.constant 1 : i32
    %158 = vector.broadcast %c1_i32_44 : i32 to vector<1x256xi32>
    %159 = arith.addi %131, %158 : vector<1x256xi32>
    %160 = vector.broadcast %159 : vector<1x256xi32> to vector<64x256xi32>
    %161 = arith.cmpi eq, %26, %160 : vector<64x256xi32>
    %cst_45 = arith.constant 0.000000e+00 : f32
    %162 = vector.shape_cast %128 : vector<1x256xf32> to vector<1x256xf32>
    %163 = vector.broadcast %162 : vector<1x256xf32> to vector<64x256xf32>
    %164 = vector.broadcast %cst_45 : f32 to vector<64x256xf32>
    %165 = arith.select %161, %163, %164 : vector<64x256xi1>, vector<64x256xf32>
    %166 = arith.addf %157, %165 : vector<64x256xf32>
    %167 = vector.broadcast %132 : vector<1x256xi32> to vector<64x256xi32>
    %168 = arith.cmpi eq, %22, %167 : vector<64x256xi32>
    %cst_46 = arith.constant 1.000000e+00 : f32
    %169 = vector.broadcast %cst_46 : f32 to vector<1x256xf32>
    %170 = arith.subf %169, %129 : vector<1x256xf32>
    %cst_47 = arith.constant 0.000000e+00 : f32
    %171 = vector.shape_cast %170 : vector<1x256xf32> to vector<1x256xf32>
    %172 = vector.broadcast %171 : vector<1x256xf32> to vector<64x256xf32>
    %173 = vector.broadcast %cst_47 : f32 to vector<64x256xf32>
    %174 = arith.select %168, %172, %173 : vector<64x256xi1>, vector<64x256xf32>
    %c1_i32_48 = arith.constant 1 : i32
    %175 = vector.broadcast %c1_i32_48 : i32 to vector<1x256xi32>
    %176 = arith.addi %132, %175 : vector<1x256xi32>
    %177 = vector.broadcast %176 : vector<1x256xi32> to vector<64x256xi32>
    %178 = arith.cmpi eq, %22, %177 : vector<64x256xi32>
    %cst_49 = arith.constant 0.000000e+00 : f32
    %179 = vector.shape_cast %129 : vector<1x256xf32> to vector<1x256xf32>
    %180 = vector.broadcast %179 : vector<1x256xf32> to vector<64x256xf32>
    %181 = vector.broadcast %cst_49 : f32 to vector<64x256xf32>
    %182 = arith.select %178, %180, %181 : vector<64x256xi1>, vector<64x256xf32>
    %183 = arith.addf %174, %182 : vector<64x256xf32>
    %184 = arith.mulf %183, %166 : vector<64x256xf32>
    %185 = arith.mulf %184, %149 : vector<64x256xf32>
    %c1_50 = arith.constant 1 : index
    %c0_51 = arith.constant 0 : index
    %c0_52 = arith.constant 0 : index
    %186 = vector.load %arg4[%c1_50, %c0_51, %c0_52] : memref<4x32x64xf32, #tpu.memory_space<vmem>>, vector<1x32x64xf32>
    %187 = vector.shape_cast %186 : vector<1x32x64xf32> to vector<32x64xf32>
    %cst_53 = arith.constant dense<0.000000e+00> : vector<32x256xf32>
    %188 = tpu.matmul %187, %185, %cst_53 {dimension_numbers = #tpu.dot_dimension_numbers<[1], [0], [0], [1], [0, 0, 1, 1], [], []>} : vector<32x64xf32>, vector<64x256xf32>, vector<32x256xf32> -> vector<32x256xf32>
    %189 = arith.addf %108, %188 : vector<32x256xf32>
    %190 = vector.extract_strided_slice %19 {offsets = [6, 0], sizes = [1, 256], strides = [1, 1]} : vector<12x256xf32> to vector<1x256xf32>
    %191 = vector.extract_strided_slice %19 {offsets = [7, 0], sizes = [1, 256], strides = [1, 1]} : vector<12x256xf32> to vector<1x256xf32>
    %192 = vector.extract_strided_slice %19 {offsets = [8, 0], sizes = [1, 256], strides = [1, 1]} : vector<12x256xf32> to vector<1x256xf32>
    %cst_54 = arith.constant 1.000000e+00 : f32
    %193 = vector.broadcast %cst_54 : f32 to vector<1x256xf32>
    %194 = arith.addf %190, %193 : vector<1x256xf32>
    %cst_55 = arith.constant 1.500000e+00 : f32
    %195 = vector.broadcast %cst_55 : f32 to vector<1x256xf32>
    %196 = arith.mulf %194, %195 : vector<1x256xf32>
    %cst_56 = arith.constant 1.000000e+00 : f32
    %197 = vector.broadcast %cst_56 : f32 to vector<1x256xf32>
    %198 = arith.addf %191, %197 : vector<1x256xf32>
    %cst_57 = arith.constant 1.500000e+00 : f32
    %199 = vector.broadcast %cst_57 : f32 to vector<1x256xf32>
    %200 = arith.mulf %198, %199 : vector<1x256xf32>
    %cst_58 = arith.constant 1.000000e+00 : f32
    %201 = vector.broadcast %cst_58 : f32 to vector<1x256xf32>
    %202 = arith.addf %192, %201 : vector<1x256xf32>
    %cst_59 = arith.constant 1.500000e+00 : f32
    %203 = vector.broadcast %cst_59 : f32 to vector<1x256xf32>
    %204 = arith.mulf %202, %203 : vector<1x256xf32>
    %205 = math.floor %196 : vector<1x256xf32>
    %206 = math.floor %200 : vector<1x256xf32>
    %207 = math.floor %204 : vector<1x256xf32>
    %208 = arith.subf %196, %205 : vector<1x256xf32>
    %209 = arith.subf %200, %206 : vector<1x256xf32>
    %210 = arith.subf %204, %207 : vector<1x256xf32>
    %211 = arith.fptosi %205 : vector<1x256xf32> to vector<1x256xi32>
    %212 = arith.fptosi %206 : vector<1x256xf32> to vector<1x256xi32>
    %213 = arith.fptosi %207 : vector<1x256xf32> to vector<1x256xi32>
    %214 = vector.broadcast %211 : vector<1x256xi32> to vector<64x256xi32>
    %215 = arith.cmpi eq, %28, %214 : vector<64x256xi32>
    %cst_60 = arith.constant 1.000000e+00 : f32
    %216 = vector.broadcast %cst_60 : f32 to vector<1x256xf32>
    %217 = arith.subf %216, %208 : vector<1x256xf32>
    %cst_61 = arith.constant 0.000000e+00 : f32
    %218 = vector.shape_cast %217 : vector<1x256xf32> to vector<1x256xf32>
    %219 = vector.broadcast %218 : vector<1x256xf32> to vector<64x256xf32>
    %220 = vector.broadcast %cst_61 : f32 to vector<64x256xf32>
    %221 = arith.select %215, %219, %220 : vector<64x256xi1>, vector<64x256xf32>
    %c1_i32_62 = arith.constant 1 : i32
    %222 = vector.broadcast %c1_i32_62 : i32 to vector<1x256xi32>
    %223 = arith.addi %211, %222 : vector<1x256xi32>
    %224 = vector.broadcast %223 : vector<1x256xi32> to vector<64x256xi32>
    %225 = arith.cmpi eq, %28, %224 : vector<64x256xi32>
    %cst_63 = arith.constant 0.000000e+00 : f32
    %226 = vector.shape_cast %208 : vector<1x256xf32> to vector<1x256xf32>
    %227 = vector.broadcast %226 : vector<1x256xf32> to vector<64x256xf32>
    %228 = vector.broadcast %cst_63 : f32 to vector<64x256xf32>
    %229 = arith.select %225, %227, %228 : vector<64x256xi1>, vector<64x256xf32>
    %230 = arith.addf %221, %229 : vector<64x256xf32>
    %231 = vector.broadcast %212 : vector<1x256xi32> to vector<64x256xi32>
    %232 = arith.cmpi eq, %26, %231 : vector<64x256xi32>
    %cst_64 = arith.constant 1.000000e+00 : f32
    %233 = vector.broadcast %cst_64 : f32 to vector<1x256xf32>
    %234 = arith.subf %233, %209 : vector<1x256xf32>
    %cst_65 = arith.constant 0.000000e+00 : f32
    %235 = vector.shape_cast %234 : vector<1x256xf32> to vector<1x256xf32>
    %236 = vector.broadcast %235 : vector<1x256xf32> to vector<64x256xf32>
    %237 = vector.broadcast %cst_65 : f32 to vector<64x256xf32>
    %238 = arith.select %232, %236, %237 : vector<64x256xi1>, vector<64x256xf32>
    %c1_i32_66 = arith.constant 1 : i32
    %239 = vector.broadcast %c1_i32_66 : i32 to vector<1x256xi32>
    %240 = arith.addi %212, %239 : vector<1x256xi32>
    %241 = vector.broadcast %240 : vector<1x256xi32> to vector<64x256xi32>
    %242 = arith.cmpi eq, %26, %241 : vector<64x256xi32>
    %cst_67 = arith.constant 0.000000e+00 : f32
    %243 = vector.shape_cast %209 : vector<1x256xf32> to vector<1x256xf32>
    %244 = vector.broadcast %243 : vector<1x256xf32> to vector<64x256xf32>
    %245 = vector.broadcast %cst_67 : f32 to vector<64x256xf32>
    %246 = arith.select %242, %244, %245 : vector<64x256xi1>, vector<64x256xf32>
    %247 = arith.addf %238, %246 : vector<64x256xf32>
    %248 = vector.broadcast %213 : vector<1x256xi32> to vector<64x256xi32>
    %249 = arith.cmpi eq, %22, %248 : vector<64x256xi32>
    %cst_68 = arith.constant 1.000000e+00 : f32
    %250 = vector.broadcast %cst_68 : f32 to vector<1x256xf32>
    %251 = arith.subf %250, %210 : vector<1x256xf32>
    %cst_69 = arith.constant 0.000000e+00 : f32
    %252 = vector.shape_cast %251 : vector<1x256xf32> to vector<1x256xf32>
    %253 = vector.broadcast %252 : vector<1x256xf32> to vector<64x256xf32>
    %254 = vector.broadcast %cst_69 : f32 to vector<64x256xf32>
    %255 = arith.select %249, %253, %254 : vector<64x256xi1>, vector<64x256xf32>
    %c1_i32_70 = arith.constant 1 : i32
    %256 = vector.broadcast %c1_i32_70 : i32 to vector<1x256xi32>
    %257 = arith.addi %213, %256 : vector<1x256xi32>
    %258 = vector.broadcast %257 : vector<1x256xi32> to vector<64x256xi32>
    %259 = arith.cmpi eq, %22, %258 : vector<64x256xi32>
    %cst_71 = arith.constant 0.000000e+00 : f32
    %260 = vector.shape_cast %210 : vector<1x256xf32> to vector<1x256xf32>
    %261 = vector.broadcast %260 : vector<1x256xf32> to vector<64x256xf32>
    %262 = vector.broadcast %cst_71 : f32 to vector<64x256xf32>
    %263 = arith.select %259, %261, %262 : vector<64x256xi1>, vector<64x256xf32>
    %264 = arith.addf %255, %263 : vector<64x256xf32>
    %265 = arith.mulf %264, %247 : vector<64x256xf32>
    %266 = arith.mulf %265, %230 : vector<64x256xf32>
    %c2_72 = arith.constant 2 : index
    %c0_73 = arith.constant 0 : index
    %c0_74 = arith.constant 0 : index
    %267 = vector.load %arg4[%c2_72, %c0_73, %c0_74] : memref<4x32x64xf32, #tpu.memory_space<vmem>>, vector<1x32x64xf32>
    %268 = vector.shape_cast %267 : vector<1x32x64xf32> to vector<32x64xf32>
    %cst_75 = arith.constant dense<0.000000e+00> : vector<32x256xf32>
    %269 = tpu.matmul %268, %266, %cst_75 {dimension_numbers = #tpu.dot_dimension_numbers<[1], [0], [0], [1], [0, 0, 1, 1], [], []>} : vector<32x64xf32>, vector<64x256xf32>, vector<32x256xf32> -> vector<32x256xf32>
    %270 = arith.addf %189, %269 : vector<32x256xf32>
    %271 = vector.extract_strided_slice %19 {offsets = [9, 0], sizes = [1, 256], strides = [1, 1]} : vector<12x256xf32> to vector<1x256xf32>
    %272 = vector.extract_strided_slice %19 {offsets = [10, 0], sizes = [1, 256], strides = [1, 1]} : vector<12x256xf32> to vector<1x256xf32>
    %273 = vector.extract_strided_slice %19 {offsets = [11, 0], sizes = [1, 256], strides = [1, 1]} : vector<12x256xf32> to vector<1x256xf32>
    %cst_76 = arith.constant 1.000000e+00 : f32
    %274 = vector.broadcast %cst_76 : f32 to vector<1x256xf32>
    %275 = arith.addf %271, %274 : vector<1x256xf32>
    %cst_77 = arith.constant 1.500000e+00 : f32
    %276 = vector.broadcast %cst_77 : f32 to vector<1x256xf32>
    %277 = arith.mulf %275, %276 : vector<1x256xf32>
    %cst_78 = arith.constant 1.000000e+00 : f32
    %278 = vector.broadcast %cst_78 : f32 to vector<1x256xf32>
    %279 = arith.addf %272, %278 : vector<1x256xf32>
    %cst_79 = arith.constant 1.500000e+00 : f32
    %280 = vector.broadcast %cst_79 : f32 to vector<1x256xf32>
    %281 = arith.mulf %279, %280 : vector<1x256xf32>
    %cst_80 = arith.constant 1.000000e+00 : f32
    %282 = vector.broadcast %cst_80 : f32 to vector<1x256xf32>
    %283 = arith.addf %273, %282 : vector<1x256xf32>
    %cst_81 = arith.constant 1.500000e+00 : f32
    %284 = vector.broadcast %cst_81 : f32 to vector<1x256xf32>
    %285 = arith.mulf %283, %284 : vector<1x256xf32>
    %286 = math.floor %277 : vector<1x256xf32>
    %287 = math.floor %281 : vector<1x256xf32>
    %288 = math.floor %285 : vector<1x256xf32>
    %289 = arith.subf %277, %286 : vector<1x256xf32>
    %290 = arith.subf %281, %287 : vector<1x256xf32>
    %291 = arith.subf %285, %288 : vector<1x256xf32>
    %292 = arith.fptosi %286 : vector<1x256xf32> to vector<1x256xi32>
    %293 = arith.fptosi %287 : vector<1x256xf32> to vector<1x256xi32>
    %294 = arith.fptosi %288 : vector<1x256xf32> to vector<1x256xi32>
    %295 = vector.broadcast %292 : vector<1x256xi32> to vector<64x256xi32>
    %296 = arith.cmpi eq, %28, %295 : vector<64x256xi32>
    %cst_82 = arith.constant 1.000000e+00 : f32
    %297 = vector.broadcast %cst_82 : f32 to vector<1x256xf32>
    %298 = arith.subf %297, %289 : vector<1x256xf32>
    %cst_83 = arith.constant 0.000000e+00 : f32
    %299 = vector.shape_cast %298 : vector<1x256xf32> to vector<1x256xf32>
    %300 = vector.broadcast %299 : vector<1x256xf32> to vector<64x256xf32>
    %301 = vector.broadcast %cst_83 : f32 to vector<64x256xf32>
    %302 = arith.select %296, %300, %301 : vector<64x256xi1>, vector<64x256xf32>
    %c1_i32_84 = arith.constant 1 : i32
    %303 = vector.broadcast %c1_i32_84 : i32 to vector<1x256xi32>
    %304 = arith.addi %292, %303 : vector<1x256xi32>
    %305 = vector.broadcast %304 : vector<1x256xi32> to vector<64x256xi32>
    %306 = arith.cmpi eq, %28, %305 : vector<64x256xi32>
    %cst_85 = arith.constant 0.000000e+00 : f32
    %307 = vector.shape_cast %289 : vector<1x256xf32> to vector<1x256xf32>
    %308 = vector.broadcast %307 : vector<1x256xf32> to vector<64x256xf32>
    %309 = vector.broadcast %cst_85 : f32 to vector<64x256xf32>
    %310 = arith.select %306, %308, %309 : vector<64x256xi1>, vector<64x256xf32>
    %311 = arith.addf %302, %310 : vector<64x256xf32>
    %312 = vector.broadcast %293 : vector<1x256xi32> to vector<64x256xi32>
    %313 = arith.cmpi eq, %26, %312 : vector<64x256xi32>
    %cst_86 = arith.constant 1.000000e+00 : f32
    %314 = vector.broadcast %cst_86 : f32 to vector<1x256xf32>
    %315 = arith.subf %314, %290 : vector<1x256xf32>
    %cst_87 = arith.constant 0.000000e+00 : f32
    %316 = vector.shape_cast %315 : vector<1x256xf32> to vector<1x256xf32>
    %317 = vector.broadcast %316 : vector<1x256xf32> to vector<64x256xf32>
    %318 = vector.broadcast %cst_87 : f32 to vector<64x256xf32>
    %319 = arith.select %313, %317, %318 : vector<64x256xi1>, vector<64x256xf32>
    %c1_i32_88 = arith.constant 1 : i32
    %320 = vector.broadcast %c1_i32_88 : i32 to vector<1x256xi32>
    %321 = arith.addi %293, %320 : vector<1x256xi32>
    %322 = vector.broadcast %321 : vector<1x256xi32> to vector<64x256xi32>
    %323 = arith.cmpi eq, %26, %322 : vector<64x256xi32>
    %cst_89 = arith.constant 0.000000e+00 : f32
    %324 = vector.shape_cast %290 : vector<1x256xf32> to vector<1x256xf32>
    %325 = vector.broadcast %324 : vector<1x256xf32> to vector<64x256xf32>
    %326 = vector.broadcast %cst_89 : f32 to vector<64x256xf32>
    %327 = arith.select %323, %325, %326 : vector<64x256xi1>, vector<64x256xf32>
    %328 = arith.addf %319, %327 : vector<64x256xf32>
    %329 = vector.broadcast %294 : vector<1x256xi32> to vector<64x256xi32>
    %330 = arith.cmpi eq, %22, %329 : vector<64x256xi32>
    %cst_90 = arith.constant 1.000000e+00 : f32
    %331 = vector.broadcast %cst_90 : f32 to vector<1x256xf32>
    %332 = arith.subf %331, %291 : vector<1x256xf32>
    %cst_91 = arith.constant 0.000000e+00 : f32
    %333 = vector.shape_cast %332 : vector<1x256xf32> to vector<1x256xf32>
    %334 = vector.broadcast %333 : vector<1x256xf32> to vector<64x256xf32>
    %335 = vector.broadcast %cst_91 : f32 to vector<64x256xf32>
    %336 = arith.select %330, %334, %335 : vector<64x256xi1>, vector<64x256xf32>
    %c1_i32_92 = arith.constant 1 : i32
    %337 = vector.broadcast %c1_i32_92 : i32 to vector<1x256xi32>
    %338 = arith.addi %294, %337 : vector<1x256xi32>
    %339 = vector.broadcast %338 : vector<1x256xi32> to vector<64x256xi32>
    %340 = arith.cmpi eq, %22, %339 : vector<64x256xi32>
    %cst_93 = arith.constant 0.000000e+00 : f32
    %341 = vector.shape_cast %291 : vector<1x256xf32> to vector<1x256xf32>
    %342 = vector.broadcast %341 : vector<1x256xf32> to vector<64x256xf32>
    %343 = vector.broadcast %cst_93 : f32 to vector<64x256xf32>
    %344 = arith.select %340, %342, %343 : vector<64x256xi1>, vector<64x256xf32>
    %345 = arith.addf %336, %344 : vector<64x256xf32>
    %346 = arith.mulf %345, %328 : vector<64x256xf32>
    %347 = arith.mulf %346, %311 : vector<64x256xf32>
    %c3 = arith.constant 3 : index
    %c0_94 = arith.constant 0 : index
    %c0_95 = arith.constant 0 : index
    %348 = vector.load %arg4[%c3, %c0_94, %c0_95] : memref<4x32x64xf32, #tpu.memory_space<vmem>>, vector<1x32x64xf32>
    %349 = vector.shape_cast %348 : vector<1x32x64xf32> to vector<32x64xf32>
    %cst_96 = arith.constant dense<0.000000e+00> : vector<32x256xf32>
    %350 = tpu.matmul %349, %347, %cst_96 {dimension_numbers = #tpu.dot_dimension_numbers<[1], [0], [0], [1], [0, 0, 1, 1], [], []>} : vector<32x64xf32>, vector<64x256xf32>, vector<32x256xf32> -> vector<32x256xf32>
    %351 = arith.addf %270, %350 : vector<32x256xf32>
    %cst_97 = arith.constant 0.000000e+00 : f32
    %352 = vector.broadcast %cst_97 : f32 to vector<32x256xf32>
    %353 = arith.maximumf %351, %352 : vector<32x256xf32>
    %c0_98 = arith.constant 0 : index
    %c0_99 = arith.constant 0 : index
    %354 = vector.load %arg5[%c0_98, %c0_99] : memref<32x32xf32, #tpu.memory_space<vmem>>, vector<32x32xf32>
    %cst_100 = arith.constant dense<0.000000e+00> : vector<32x256xf32>
    %355 = tpu.matmul %354, %353, %cst_100 {dimension_numbers = #tpu.dot_dimension_numbers<[1], [0], [0], [1], [0, 0, 1, 1], [], []>} : vector<32x32xf32>, vector<32x256xf32>, vector<32x256xf32> -> vector<32x256xf32>
    %cst_101 = arith.constant 0.000000e+00 : f32
    %356 = vector.broadcast %cst_101 : f32 to vector<32x256xf32>
    %357 = arith.maximumf %355, %356 : vector<32x256xf32>
    %c0_102 = arith.constant 0 : index
    %c0_103 = arith.constant 0 : index
    %358 = vector.load %arg6[%c0_102, %c0_103] : memref<1x32xf32, #tpu.memory_space<vmem>>, vector<1x32xf32>
    %cst_104 = arith.constant dense<0.000000e+00> : vector<1x256xf32>
    %359 = tpu.matmul %358, %357, %cst_104 {dimension_numbers = #tpu.dot_dimension_numbers<[1], [0], [0], [1], [0, 0, 1, 1], [], []>} : vector<1x32xf32>, vector<32x256xf32>, vector<1x256xf32> -> vector<1x256xf32>
    %c0_105 = arith.constant 0 : index
    %360 = memref.load %arg7[%c0_105] : memref<2xf32, #tpu.memory_space<smem>>
    %361 = vector.broadcast %360 : f32 to vector<1x256xf32>
    %362 = arith.mulf %359, %361 : vector<1x256xf32>
    %c1_106 = arith.constant 1 : index
    %363 = memref.load %arg7[%c1_106] : memref<2xf32, #tpu.memory_space<smem>>
    %364 = vector.broadcast %363 : f32 to vector<1x256xf32>
    %365 = arith.addf %362, %364 : vector<1x256xf32>
    %c0_107 = arith.constant 0 : index
    %c0_108 = arith.constant 0 : index
    %366 = vector.load %arg8[%c0_107, %c0_108] : memref<1x256xf32, #tpu.memory_space<vmem>>, vector<1x256xf32>
    tpu.vector_store %arg8[%c0_107, %c0_108], %365 {strides = array<i32>} : memref<1x256xf32, #tpu.memory_space<vmem>>, vector<1x256xf32>,
    return
  }
  func.func @transform_0(%arg0: i32) -> (i32, i32) {
    %c0_i32 = arith.constant 0 : i32
    %c0_i32_0 = arith.constant 0 : i32
    return %c0_i32, %arg0 : i32, i32
  }
  func.func @transform_1(%arg0: i32) -> (i32, i32) {
    %c0_i32 = arith.constant 0 : i32
    %c0_i32_0 = arith.constant 0 : i32
    %c0_i32_1 = arith.constant 0 : i32
    return %c0_i32, %c0_i32_0 : i32, i32
  }
  func.func @transform_2(%arg0: i32) -> (i32, i32) {
    %c0_i32 = arith.constant 0 : i32
    %c0_i32_0 = arith.constant 0 : i32
    %c0_i32_1 = arith.constant 0 : i32
    return %c0_i32, %c0_i32_0 : i32, i32
  }
  func.func @transform_3(%arg0: i32) -> (i32, i32, i32) {
    %c0_i32 = arith.constant 0 : i32
    %c0_i32_0 = arith.constant 0 : i32
    %c0_i32_1 = arith.constant 0 : i32
    %c0_i32_2 = arith.constant 0 : i32
    return %c0_i32, %c0_i32_0, %c0_i32_1 : i32, i32, i32
  }
  func.func @transform_4(%arg0: i32) -> (i32, i32) {
    %c0_i32 = arith.constant 0 : i32
    %c0_i32_0 = arith.constant 0 : i32
    %c0_i32_1 = arith.constant 0 : i32
    return %c0_i32, %c0_i32_0 : i32, i32
  }
  func.func @transform_5(%arg0: i32) -> (i32, i32) {
    %c0_i32 = arith.constant 0 : i32
    %c0_i32_0 = arith.constant 0 : i32
    %c0_i32_1 = arith.constant 0 : i32
    return %c0_i32, %c0_i32_0 : i32, i32
  }
  func.func @transform_6(%arg0: i32) -> i32 {
    %c0_i32 = arith.constant 0 : i32
    %c0_i32_0 = arith.constant 0 : i32
    return %c0_i32 : i32
  }
  func.func @transform_7(%arg0: i32) -> (i32, i32) {
    %c0_i32 = arith.constant 0 : i32
    %c0_i32_0 = arith.constant 0 : i32
    return %c0_i32, %arg0 : i32, i32
  }
}

</mosaic_0001>

<llo_original>
// kernel: tvamgsrn_forward.1
$region0: #{tvamgsrn_forward.1}
  #allocation0 [shape = 'u32[]', space=smem, size = 0x4, offset = 0x4, fixed_abs, tag = 'smem constant byte address 0x4 - core index']
  #allocation1 [shape = 'u32[144,128]{1,0:T(1,128)}', space=vmem, size = 0x12000, scoped, tag = 'internal scratch']
  %s0 = inlined_call_operand.vmem [shape: f32[3,256], index: 0, kind: input, shape index: {}]
  %s1 = inlined_call_operand.vmem [shape: f32[12,3], index: 1, kind: input, shape index: {}]
  %s2 = inlined_call_operand.vmem [shape: f32[12,1], index: 2, kind: input, shape index: {}]
  %s3 = inlined_call_operand.vmem [shape: f32[4,32,64], index: 3, kind: input, shape index: {}]
  %s4 = inlined_call_operand.vmem [shape: f32[32,32], index: 4, kind: input, shape index: {}]
  %s5 = inlined_call_operand.vmem [shape: f32[1,32], index: 5, kind: input, shape index: {}]
  %s6 = inlined_call_operand.vmem [shape: f32[2], index: 6, kind: input, shape index: {}]
  %s7 = inlined_call_operand.hbm [shape: f32[1,256], index: 7, kind: output, shape index: {}]
  %s8 = sld [smem:[#allocation0]]
  $region42: #{tvamgsrn_forward.1} parent=0
    _
  %s10 = ssub.s32 1, %s8
  %s11 = scalar_select 0, %s10, %s8
  $region1: #{tvamgsrn_forward.1} parent=0
    #allocation2 [shape = 'u8[512]{0}', space=smem, size = 0x200, scoped, tag = 'input window, operand 6, single buffered']
    #allocation3 [shape = 's32[1]{0}', space=sflag, size = 0x4, scoped, tag = 'scoped memory for tvamgsrn_forward.1']
    #allocation4 [shape = 's32[1]{0}', space=sflag, size = 0x4, scoped, tag = 'scoped memory for tvamgsrn_forward.1']
    #allocation5 [shape = 'u8[1024]{0}', space=vmem, size = 0x400, scoped, tag = 'output window, operand 0, single buffered']
    %12 = vsyncpa [#allocation4], 0
    %13 = vsyncpa [#allocation3], 0
    // Predicated region
    $region2: #{tvamgsrn_forward.1} parent=1 // pred_check
      _
    $region3: #{tvamgsrn_forward.1} parent=1 // pred_check_branch
      %15 = sbr.rel (0) target = $region5
    $region4: #{tvamgsrn_forward.1} parent=1 // pred_region
      _
    $region5: #{tvamgsrn_forward.1} parent=1 // pred_fallthru
      _
    // Predicated region
    $region6: #{tvamgsrn_forward.1} parent=1 // pred_check
      _
    $region7: #{tvamgsrn_forward.1} parent=1 // pred_check_branch
      %17 = sbr.rel (0) target = $region9
    $region8: #{tvamgsrn_forward.1} parent=1 // pred_region
      _
    $region9: #{tvamgsrn_forward.1} parent=1 // pred_fallthru
      _
    // Predicated region
    $region10: #{tvamgsrn_forward.1} parent=1 // pred_check
      _
    $region11: #{tvamgsrn_forward.1} parent=1 // pred_check_branch
      %19 = sbr.rel (0) target = $region13
    $region12: #{tvamgsrn_forward.1} parent=1 // pred_region
      _
    $region13: #{tvamgsrn_forward.1} parent=1 // pred_fallthru
      _
    // Predicated region
    $region14: #{tvamgsrn_forward.1} parent=1 // pred_check
      _
    $region15: #{tvamgsrn_forward.1} parent=1 // pred_check_branch
      %21 = sbr.rel (0) target = $region17
    $region16: #{tvamgsrn_forward.1} parent=1 // pred_region
      _
    $region17: #{tvamgsrn_forward.1} parent=1 // pred_fallthru
      _
    // Predicated region
    $region18: #{tvamgsrn_forward.1} parent=1 // pred_check
      _
    $region19: #{tvamgsrn_forward.1} parent=1 // pred_check_branch
      %23 = sbr.rel (0) target = $region21
    $region20: #{tvamgsrn_forward.1} parent=1 // pred_region
      _
    $region21: #{tvamgsrn_forward.1} parent=1 // pred_fallthru
      _
    // Predicated region
    $region22: #{tvamgsrn_forward.1} parent=1 // pred_check
      _
    $region23: #{tvamgsrn_forward.1} parent=1 // pred_check_branch
      %25 = sbr.rel (0) target = $region25
    $region24: #{tvamgsrn_forward.1} parent=1 // pred_region
      _
    $region25: #{tvamgsrn_forward.1} parent=1 // pred_fallthru
      _
    // Predicated region
    $region26: #{tvamgsrn_forward.1} parent=1 // pred_check
      _
    $region27: #{tvamgsrn_forward.1} parent=1 // pred_check_branch
      %27 = sbr.rel (0) target = $region29
    $region28: #{tvamgsrn_forward.1} parent=1 // pred_region
      %s29 = ssub.s32 16, 16
      %30 = vsyncadd [#allocation4], %s29
      %s32 = sshll.u32 %s6, 4
      %s33 = int_to_ptr.vmem [resolvable:$true] %s32
      %35 = dma.vmem_to_smem %s33, 16, [#allocation2], [#allocation4]
    $region29: #{tvamgsrn_forward.1} parent=1 // pred_fallthru
      _
    // Predicated region
    $region30: #{tvamgsrn_forward.1} parent=1 // pred_check
      _
    $region31: #{tvamgsrn_forward.1} parent=1 // pred_check_branch
      %37 = sbr.rel (0) target = $region33
    $region32: #{tvamgsrn_forward.1} parent=1 // pred_region
      %38 = dma.done [#allocation4], 16
    $region33: #{tvamgsrn_forward.1} parent=1 // pred_fallthru
      _
    %39 = sfence
    %v40 = vld [vmem:[%s1] sm:$0xff]
    %v41 = vld [vmem:[%s1 + $0x8] sm:$0xf]
    %v42 = vld [vmem:[%s0] ss:$4 sm:$0x3]
    %44 = vset.pattern.permute.xlu0 0
    %45 = vperm.xlu0 %44, %v40
    %v46 = vpop.permute.xlu0 %45
    %49 = vset.pattern.permute.xlu0 0
    %50 = vperm.xlu0 %49, %v41
    %v51 = vpop.permute.xlu0 %50
    %v54 = vlaneseq
    %v55 = vshrl.u32 %v54, 7
    %v56 = vsub.s32 0, %v55
    %v57 = vrot.slane %v42, %v56
    %v58 = vlaneseq
    %v59 = vshrl.u32 %v58, 7
    %v60 = vsub.s32 1, %v59
    %v61 = vrot.slane %v42, %v60
    %v64 = vmul.f32 %v46, %v57
    %v65 = vmul.f32 %v46, %v61
    %v66 = vmul.f32 %v51, %v57
    %v67 = vmul.f32 %v51, %v61
    %s68 = scalar_lea.vmem %s0, 1
    %v69 = vld [vmem:[%s68] ss:$4 sm:$0x3]
    %70 = vset.pattern.permute.xlu0 1
    %71 = vperm.xlu0 %70, %v40
    %v72 = vpop.permute.xlu0 %71
    %74 = vset.pattern.permute.xlu0 1
    %75 = vperm.xlu0 %74, %v41
    %v76 = vpop.permute.xlu0 %75
    %v79 = vlaneseq
    %v80 = vshrl.u32 %v79, 7
    %v81 = vsub.s32 0, %v80
    %v82 = vrot.slane %v69, %v81
    %v83 = vlaneseq
    %v84 = vshrl.u32 %v83, 7
    %v85 = vsub.s32 1, %v84
    %v86 = vrot.slane %v69, %v85
    %v89 = vmul.f32 %v72, %v82
    %v90 = vmul.f32 %v72, %v86
    %v91 = vmul.f32 %v76, %v82
    %v92 = vmul.f32 %v76, %v86
    %v93 = vadd.f32 %v64, %v89
    %v94 = vadd.f32 %v65, %v90
    %v95 = vadd.f32 %v66, %v91
    %v96 = vadd.f32 %v67, %v92
    %s97 = scalar_lea.vmem %s0, 2
    %v98 = vld [vmem:[%s97] ss:$4 sm:$0x3]
    %99 = vset.pattern.permute.xlu0 2
    %100 = vperm.xlu0 %99, %v40
    %v101 = vpop.permute.xlu0 %100
    %103 = vset.pattern.permute.xlu0 2
    %104 = vperm.xlu0 %103, %v41
    %v105 = vpop.permute.xlu0 %104
    %v108 = vlaneseq
    %v109 = vshrl.u32 %v108, 7
    %v110 = vsub.s32 0, %v109
    %v111 = vrot.slane %v98, %v110
    %v112 = vlaneseq
    %v113 = vshrl.u32 %v112, 7
    %v114 = vsub.s32 1, %v113
    %v115 = vrot.slane %v98, %v114
    %v118 = vmul.f32 %v101, %v111
    %v119 = vmul.f32 %v101, %v115
    %v120 = vmul.f32 %v105, %v111
    %v121 = vmul.f32 %v105, %v115
    %v122 = vadd.f32 %v93, %v118
    %v123 = vadd.f32 %v94, %v119
    %v124 = vadd.f32 %v95, %v120
    %v125 = vadd.f32 %v96, %v121
    %v126 = vld [vmem:[%s2] sm:$0xff]
    %v127 = vld [vmem:[%s2 + $0x8] sm:$0xf]
    %129 = vset.pattern.permute.xlu0 0
    %130 = vperm.xlu0 %129, %v126
    %v131 = vpop.permute.xlu0 %130
    %134 = vset.pattern.permute.xlu0 0
    %135 = vperm.xlu0 %134, %v127
    %v136 = vpop.permute.xlu0 %135
    %v138 = vadd.f32 %v122, %v131
    %v139 = vadd.f32 %v123, %v131
    %v140 = vadd.f32 %v124, %v136
    %v141 = vadd.f32 %v125, %v136
    %v142 = vlaneseq
    %v143 = vshrl.u32 %v142, 7
    %v144 = vadd.s32 %v143, 8
    %v145 = vadd.s32 %v143, 16
    %v146 = vadd.s32 %v143, 24
    %v147 = vadd.s32 %v143, 32
    %v148 = vadd.s32 %v143, 40
    %v149 = vadd.s32 %v143, 48
    %v150 = vadd.s32 %v143, 56
    %v151 = vshra.s32 %v143, 4
    %v152 = vshra.s32 %v144, 4
    %v153 = vshra.s32 %v145, 4
    %v154 = vshra.s32 %v146, 4
    %v155 = vshra.s32 %v147, 4
    %v156 = vshra.s32 %v148, 4
    %v157 = vshra.s32 %v149, 4
    %v158 = vshra.s32 %v150, 4
    %v159 = vshra.s32 %v143, 2
    %v160 = vshra.s32 %v144, 2
    %v161 = vshra.s32 %v145, 2
    %v162 = vshra.s32 %v146, 2
    %v163 = vshra.s32 %v147, 2
    %v164 = vshra.s32 %v148, 2
    %v165 = vshra.s32 %v149, 2
    %v166 = vshra.s32 %v150, 2
    %v167 = vand.u32 %v159, 3
    %v168 = vand.u32 %v160, 3
    %v169 = vand.u32 %v161, 3
    %v170 = vand.u32 %v162, 3
    %v171 = vand.u32 %v163, 3
    %v172 = vand.u32 %v164, 3
    %v173 = vand.u32 %v165, 3
    %v174 = vand.u32 %v166, 3
    %v175 = vand.u32 %v143, 3
    %v176 = vand.u32 %v144, 3
    %v177 = vand.u32 %v145, 3
    %v178 = vand.u32 %v146, 3
    %v179 = vand.u32 %v147, 3
    %v180 = vand.u32 %v148, 3
    %v181 = vand.u32 %v149, 3
    %v182 = vand.u32 %v150, 3
    %v183 = vadd.f32 %v138, 1.0
    %v184 = vadd.f32 %v139, 1.0
    %v185 = vmul.f32 %v183, 1.5
    %v186 = vmul.f32 %v184, 1.5
    %v187 = vfloor.f32 %v185
    %v188 = vfloor.f32 %v186
    %v189 = vsub.f32 %v185, %v187
    %v190 = vsub.f32 %v186, %v188
    %v191 = vcvt.f32.s32.to.zero.pseudo %v187
    %v192 = vcvt.f32.s32.to.zero.pseudo %v188
    %v193 = vlaneseq
    %v194 = vshrl.u32 %v193, 7
    %v195 = vsub.s32 0, %v194
    %v196 = vrot.slane %v191, %v195
    %v197 = vlaneseq
    %v198 = vshrl.u32 %v197, 7
    %v199 = vsub.s32 0, %v198
    %v200 = vrot.slane %v192, %v199
    %vm201 = vcmp.eq.s32.totalorder %v175, %v196
    %vm202 = vcmp.eq.s32.totalorder %v175, %v200
    %vm203 = vcmp.eq.s32.totalorder %v176, %v196
    %vm204 = vcmp.eq.s32.totalorder %v176, %v200
    %vm205 = vcmp.eq.s32.totalorder %v177, %v196
    %vm206 = vcmp.eq.s32.totalorder %v177, %v200
    %vm207 = vcmp.eq.s32.totalorder %v178, %v196
    %vm208 = vcmp.eq.s32.totalorder %v178, %v200
    %vm209 = vcmp.eq.s32.totalorder %v179, %v196
    %vm210 = vcmp.eq.s32.totalorder %v179, %v200
    %vm211 = vcmp.eq.s32.totalorder %v180, %v196
    %vm212 = vcmp.eq.s32.totalorder %v180, %v200
    %vm213 = vcmp.eq.s32.totalorder %v181, %v196
    %vm214 = vcmp.eq.s32.totalorder %v181, %v200
    %vm215 = vcmp.eq.s32.totalorder %v182, %v196
    %vm216 = vcmp.eq.s32.totalorder %v182, %v200
    %v217 = vsub.f32 1.0, %v189
    %v218 = vsub.f32 1.0, %v190
    %v219 = vlaneseq
    %v220 = vshrl.u32 %v219, 7
    %v221 = vsub.s32 0, %v220
    %v222 = vrot.slane %v217, %v221
    %v223 = vlaneseq
    %v224 = vshrl.u32 %v223, 7
    %v225 = vsub.s32 0, %v224
    %v226 = vrot.slane %v218, %v225
    %v227 = vsel %vm201, %v222, 0.0
    %v228 = vsel %vm202, %v226, 0.0
    %v229 = vsel %vm203, %v222, 0.0
    %v230 = vsel %vm204, %v226, 0.0
    %v231 = vsel %vm205, %v222, 0.0
    %v232 = vsel %vm206, %v226, 0.0
    %v233 = vsel %vm207, %v222, 0.0
    %v234 = vsel %vm208, %v226, 0.0
    %v235 = vsel %vm209, %v222, 0.0
    %v236 = vsel %vm210, %v226, 0.0
    %v237 = vsel %vm211, %v222, 0.0
    %v238 = vsel %vm212, %v226, 0.0
    %v239 = vsel %vm213, %v222, 0.0
    %v240 = vsel %vm214, %v226, 0.0
    %v241 = vsel %vm215, %v222, 0.0
    %v242 = vsel %vm216, %v226, 0.0
    %v243 = vadd.s32 %v191, 1
    %v244 = vadd.s32 %v192, 1
    %v245 = vlaneseq
    %v246 = vshrl.u32 %v245, 7
    %v247 = vsub.s32 0, %v246
    %v248 = vrot.slane %v243, %v247
    %v249 = vlaneseq
    %v250 = vshrl.u32 %v249, 7
    %v251 = vsub.s32 0, %v250
    %v252 = vrot.slane %v244, %v251
    %vm253 = vcmp.eq.s32.totalorder %v175, %v248
    %vm254 = vcmp.eq.s32.totalorder %v175, %v252
    %vm255 = vcmp.eq.s32.totalorder %v176, %v248
    %vm256 = vcmp.eq.s32.totalorder %v176, %v252
    %vm257 = vcmp.eq.s32.totalorder %v177, %v248
    %vm258 = vcmp.eq.s32.totalorder %v177, %v252
    %vm259 = vcmp.eq.s32.totalorder %v178, %v248
    %vm260 = vcmp.eq.s32.totalorder %v178, %v252
    %vm261 = vcmp.eq.s32.totalorder %v179, %v248
    %vm262 = vcmp.eq.s32.totalorder %v179, %v252
    %vm263 = vcmp.eq.s32.totalorder %v180, %v248
    %vm264 = vcmp.eq.s32.totalorder %v180, %v252
    %vm265 = vcmp.eq.s32.totalorder %v181, %v248
    %vm266 = vcmp.eq.s32.totalorder %v181, %v252
    %vm267 = vcmp.eq.s32.totalorder %v182, %v248
    %vm268 = vcmp.eq.s32.totalorder %v182, %v252
    %v269 = vlaneseq
    %v270 = vshrl.u32 %v269, 7
    %v271 = vsub.s32 0, %v270
    %v272 = vrot.slane %v189, %v271
    %v273 = vlaneseq
    %v274 = vshrl.u32 %v273, 7
    %v275 = vsub.s32 0, %v274
    %v276 = vrot.slane %v190, %v275
    %v277 = vsel %vm253, %v272, 0.0
    %v278 = vsel %vm254, %v276, 0.0
    %v279 = vsel %vm255, %v272, 0.0
    %v280 = vsel %vm256, %v276, 0.0
    %v281 = vsel %vm257, %v272, 0.0
    %v282 = vsel %vm258, %v276, 0.0
    %v283 = vsel %vm259, %v272, 0.0
    %v284 = vsel %vm260, %v276, 0.0
    %v285 = vsel %vm261, %v272, 0.0
    %v286 = vsel %vm262, %v276, 0.0
    %v287 = vsel %vm263, %v272, 0.0
    %v288 = vsel %vm264, %v276, 0.0
    %v289 = vsel %vm265, %v272, 0.0
    %v290 = vsel %vm266, %v276, 0.0
    %v291 = vsel %vm267, %v272, 0.0
    %v292 = vsel %vm268, %v276, 0.0
    %v293 = vadd.f32 %v227, %v277
    %v294 = vadd.f32 %v228, %v278
    %v295 = vadd.f32 %v229, %v279
    %v296 = vadd.f32 %v230, %v280
    %v297 = vadd.f32 %v231, %v281
    %v298 = vadd.f32 %v232, %v282
    %v299 = vadd.f32 %v233, %v283
    %v300 = vadd.f32 %v234, %v284
    %v301 = vadd.f32 %v235, %v285
    %v302 = vadd.f32 %v236, %v286
    %v303 = vadd.f32 %v237, %v287
    %v304 = vadd.f32 %v238, %v288
    %v305 = vadd.f32 %v239, %v289
    %v306 = vadd.f32 %v240, %v290
    %v307 = vadd.f32 %v241, %v291
    %v308 = vadd.f32 %v242, %v292
    %v309 = vlaneseq
    %v310 = vshrl.u32 %v309, 7
    %v311 = vsub.s32 1, %v310
    %v312 = vrot.slane %v191, %v311
    %v313 = vlaneseq
    %v314 = vshrl.u32 %v313, 7
    %v315 = vsub.s32 1, %v314
    %v316 = vrot.slane %v192, %v315
    %vm317 = vcmp.eq.s32.totalorder %v167, %v312
    %vm318 = vcmp.eq.s32.totalorder %v167, %v316
    %vm319 = vcmp.eq.s32.totalorder %v168, %v312
    %vm320 = vcmp.eq.s32.totalorder %v168, %v316
    %vm321 = vcmp.eq.s32.totalorder %v169, %v312
    %vm322 = vcmp.eq.s32.totalorder %v169, %v316
    %vm323 = vcmp.eq.s32.totalorder %v170, %v312
    %vm324 = vcmp.eq.s32.totalorder %v170, %v316
    %vm325 = vcmp.eq.s32.totalorder %v171, %v312
    %vm326 = vcmp.eq.s32.totalorder %v171, %v316
    %vm327 = vcmp.eq.s32.totalorder %v172, %v312
    %vm328 = vcmp.eq.s32.totalorder %v172, %v316
    %vm329 = vcmp.eq.s32.totalorder %v173, %v312
    %vm330 = vcmp.eq.s32.totalorder %v173, %v316
    %vm331 = vcmp.eq.s32.totalorder %v174, %v312
    %vm332 = vcmp.eq.s32.totalorder %v174, %v316
    %v333 = vlaneseq
    %v334 = vshrl.u32 %v333, 7
    %v335 = vsub.s32 1, %v334
    %v336 = vrot.slane %v217, %v335
    %v337 = vlaneseq
    %v338 = vshrl.u32 %v337, 7
    %v339 = vsub.s32 1, %v338
    %v340 = vrot.slane %v218, %v339
    %v341 = vsel %vm317, %v336, 0.0
    %v342 = vsel %vm318, %v340, 0.0
    %v343 = vsel %vm319, %v336, 0.0
    %v344 = vsel %vm320, %v340, 0.0
    %v345 = vsel %vm321, %v336, 0.0
    %v346 = vsel %vm322, %v340, 0.0
    %v347 = vsel %vm323, %v336, 0.0
    %v348 = vsel %vm324, %v340, 0.0
    %v349 = vsel %vm325, %v336, 0.0
    %v350 = vsel %vm326, %v340, 0.0
    %v351 = vsel %vm327, %v336, 0.0
    %v352 = vsel %vm328, %v340, 0.0
    %v353 = vsel %vm329, %v336, 0.0
    %v354 = vsel %vm330, %v340, 0.0
    %v355 = vsel %vm331, %v336, 0.0
    %v356 = vsel %vm332, %v340, 0.0
    %v357 = vlaneseq
    %v358 = vshrl.u32 %v357, 7
    %v359 = vsub.s32 1, %v358
    %v360 = vrot.slane %v243, %v359
    %v361 = vlaneseq
    %v362 = vshrl.u32 %v361, 7
    %v363 = vsub.s32 1, %v362
    %v364 = vrot.slane %v244, %v363
    %vm365 = vcmp.eq.s32.totalorder %v167, %v360
    %vm366 = vcmp.eq.s32.totalorder %v167, %v364
    %vm367 = vcmp.eq.s32.totalorder %v168, %v360
    %vm368 = vcmp.eq.s32.totalorder %v168, %v364
    %vm369 = vcmp.eq.s32.totalorder %v169, %v360
    %vm370 = vcmp.eq.s32.totalorder %v169, %v364
    %vm371 = vcmp.eq.s32.totalorder %v170, %v360
    %vm372 = vcmp.eq.s32.totalorder %v170, %v364
    %vm373 = vcmp.eq.s32.totalorder %v171, %v360
    %vm374 = vcmp.eq.s32.totalorder %v171, %v364
    %vm375 = vcmp.eq.s32.totalorder %v172, %v360
    %vm376 = vcmp.eq.s32.totalorder %v172, %v364
    %vm377 = vcmp.eq.s32.totalorder %v173, %v360
    %vm378 = vcmp.eq.s32.totalorder %v173, %v364
    %vm379 = vcmp.eq.s32.totalorder %v174, %v360
    %vm380 = vcmp.eq.s32.totalorder %v174, %v364
    %v381 = vlaneseq
    %v382 = vshrl.u32 %v381, 7
    %v383 = vsub.s32 1, %v382
    %v384 = vrot.slane %v189, %v383
    %v385 = vlaneseq
    %v386 = vshrl.u32 %v385, 7
    %v387 = vsub.s32 1, %v386
    %v388 = vrot.slane %v190, %v387
    %v389 = vsel %vm365, %v384, 0.0
    %v390 = vsel %vm366, %v388, 0.0
    %v391 = vsel %vm367, %v384, 0.0
    %v392 = vsel %vm368, %v388, 0.0
    %v393 = vsel %vm369, %v384, 0.0
    %v394 = vsel %vm370, %v388, 0.0
    %v395 = vsel %vm371, %v384, 0.0
    %v396 = vsel %vm372, %v388, 0.0
    %v397 = vsel %vm373, %v384, 0.0
    %v398 = vsel %vm374, %v388, 0.0
    %v399 = vsel %vm375, %v384, 0.0
    %v400 = vsel %vm376, %v388, 0.0
    %v401 = vsel %vm377, %v384, 0.0
    %v402 = vsel %vm378, %v388, 0.0
    %v403 = vsel %vm379, %v384, 0.0
    %v404 = vsel %vm380, %v388, 0.0
    %v405 = vadd.f32 %v341, %v389
    %v406 = vadd.f32 %v342, %v390
    %v407 = vadd.f32 %v343, %v391
    %v408 = vadd.f32 %v344, %v392
    %v409 = vadd.f32 %v345, %v393
    %v410 = vadd.f32 %v346, %v394
    %v411 = vadd.f32 %v347, %v395
    %v412 = vadd.f32 %v348, %v396
    %v413 = vadd.f32 %v349, %v397
    %v414 = vadd.f32 %v350, %v398
    %v415 = vadd.f32 %v351, %v399
    %v416 = vadd.f32 %v352, %v400
    %v417 = vadd.f32 %v353, %v401
    %v418 = vadd.f32 %v354, %v402
    %v419 = vadd.f32 %v355, %v403
    %v420 = vadd.f32 %v356, %v404
    %v421 = vlaneseq
    %v422 = vshrl.u32 %v421, 7
    %v423 = vsub.s32 2, %v422
    %v424 = vrot.slane %v191, %v423
    %v425 = vlaneseq
    %v426 = vshrl.u32 %v425, 7
    %v427 = vsub.s32 2, %v426
    %v428 = vrot.slane %v192, %v427
    %vm429 = vcmp.eq.s32.totalorder %v151, %v424
    %vm430 = vcmp.eq.s32.totalorder %v151, %v428
    %vm431 = vcmp.eq.s32.totalorder %v152, %v424
    %vm432 = vcmp.eq.s32.totalorder %v152, %v428
    %vm433 = vcmp.eq.s32.totalorder %v153, %v424
    %vm434 = vcmp.eq.s32.totalorder %v153, %v428
    %vm435 = vcmp.eq.s32.totalorder %v154, %v424
    %vm436 = vcmp.eq.s32.totalorder %v154, %v428
    %vm437 = vcmp.eq.s32.totalorder %v155, %v424
    %vm438 = vcmp.eq.s32.totalorder %v155, %v428
    %vm439 = vcmp.eq.s32.totalorder %v156, %v424
    %vm440 = vcmp.eq.s32.totalorder %v156, %v428
    %vm441 = vcmp.eq.s32.totalorder %v157, %v424
    %vm442 = vcmp.eq.s32.totalorder %v157, %v428
    %vm443 = vcmp.eq.s32.totalorder %v158, %v424
    %vm444 = vcmp.eq.s32.totalorder %v158, %v428
    %v445 = vlaneseq
    %v446 = vshrl.u32 %v445, 7
    %v447 = vsub.s32 2, %v446
    %v448 = vrot.slane %v217, %v447
    %v449 = vlaneseq
    %v450 = vshrl.u32 %v449, 7
    %v451 = vsub.s32 2, %v450
    %v452 = vrot.slane %v218, %v451
    %v453 = vsel %vm429, %v448, 0.0
    %v454 = vsel %vm430, %v452, 0.0
    %v455 = vsel %vm431, %v448, 0.0
    %v456 = vsel %vm432, %v452, 0.0
    %v457 = vsel %vm433, %v448, 0.0
    %v458 = vsel %vm434, %v452, 0.0
    %v459 = vsel %vm435, %v448, 0.0
    %v460 = vsel %vm436, %v452, 0.0
    %v461 = vsel %vm437, %v448, 0.0
    %v462 = vsel %vm438, %v452, 0.0
    %v463 = vsel %vm439, %v448, 0.0
    %v464 = vsel %vm440, %v452, 0.0
    %v465 = vsel %vm441, %v448, 0.0
    %v466 = vsel %vm442, %v452, 0.0
    %v467 = vsel %vm443, %v448, 0.0
    %v468 = vsel %vm444, %v452, 0.0
    %v469 = vlaneseq
    %v470 = vshrl.u32 %v469, 7
    %v471 = vsub.s32 2, %v470
    %v472 = vrot.slane %v243, %v471
    %v473 = vlaneseq
    %v474 = vshrl.u32 %v473, 7
    %v475 = vsub.s32 2, %v474
    %v476 = vrot.slane %v244, %v475
    %vm477 = vcmp.eq.s32.totalorder %v151, %v472
    %vm478 = vcmp.eq.s32.totalorder %v151, %v476
    %vm479 = vcmp.eq.s32.totalorder %v152, %v472
    %vm480 = vcmp.eq.s32.totalorder %v152, %v476
    %vm481 = vcmp.eq.s32.totalorder %v153, %v472
    %vm482 = vcmp.eq.s32.totalorder %v153, %v476
    %vm483 = vcmp.eq.s32.totalorder %v154, %v472
    %vm484 = vcmp.eq.s32.totalorder %v154, %v476
    %vm485 = vcmp.eq.s32.totalorder %v155, %v472
    %vm486 = vcmp.eq.s32.totalorder %v155, %v476
    %vm487 = vcmp.eq.s32.totalorder %v156, %v472
    %vm488 = vcmp.eq.s32.totalorder %v156, %v476
    %vm489 = vcmp.eq.s32.totalorder %v157, %v472
    %vm490 = vcmp.eq.s32.totalorder %v157, %v476
    %vm491 = vcmp.eq.s32.totalorder %v158, %v472
    %vm492 = vcmp.eq.s32.totalorder %v158, %v476
    %v493 = vlaneseq
    %v494 = vshrl.u32 %v493, 7
    %v495 = vsub.s32 2, %v494
    %v496 = vrot.slane %v189, %v495
    %v497 = vlaneseq
    %v498 = vshrl.u32 %v497, 7
    %v499 = vsub.s32 2, %v498
    %v500 = vrot.slane %v190, %v499
    %v501 = vsel %vm477, %v496, 0.0
    %v502 = vsel %vm478, %v500, 0.0
    %v503 = vsel %vm479, %v496, 0.0
    %v504 = vsel %vm480, %v500, 0.0
    %v505 = vsel %vm481, %v496, 0.0
    %v506 = vsel %vm482, %v500, 0.0
    %v507 = vsel %vm483, %v496, 0.0
    %v508 = vsel %vm484, %v500, 0.0
    %v509 = vsel %vm485, %v496, 0.0
    %v510 = vsel %vm486, %v500, 0.0
    %v511 = vsel %vm487, %v496, 0.0
    %v512 = vsel %vm488, %v500, 0.0
    %v513 = vsel %vm489, %v496, 0.0
    %v514 = vsel %vm490, %v500, 0.0
    %v515 = vsel %vm491, %v496, 0.0
    %v516 = vsel %vm492, %v500, 0.0
    %v517 = vadd.f32 %v453, %v501
    %v518 = vadd.f32 %v454, %v502
    %v519 = vadd.f32 %v455, %v503
    %v520 = vadd.f32 %v456, %v504
    %v521 = vadd.f32 %v457, %v505
    %v522 = vadd.f32 %v458, %v506
    %v523 = vadd.f32 %v459, %v507
    %v524 = vadd.f32 %v460, %v508
    %v525 = vadd.f32 %v461, %v509
    %v526 = vadd.f32 %v462, %v510
    %v527 = vadd.f32 %v463, %v511
    %v528 = vadd.f32 %v464, %v512
    %v529 = vadd.f32 %v465, %v513
    %v530 = vadd.f32 %v466, %v514
    %v531 = vadd.f32 %v467, %v515
    %v532 = vadd.f32 %v468, %v516
    %v533 = vmul.f32 %v517, %v405
    %v534 = vmul.f32 %v518, %v406
    %v535 = vmul.f32 %v519, %v407
    %v536 = vmul.f32 %v520, %v408
    %v537 = vmul.f32 %v521, %v409
    %v538 = vmul.f32 %v522, %v410
    %v539 = vmul.f32 %v523, %v411
    %v540 = vmul.f32 %v524, %v412
    %v541 = vmul.f32 %v525, %v413
    %v542 = vmul.f32 %v526, %v414
    %v543 = vmul.f32 %v527, %v415
    %v544 = vmul.f32 %v528, %v416
    %v545 = vmul.f32 %v529, %v417
    %v546 = vmul.f32 %v530, %v418
    %v547 = vmul.f32 %v531, %v419
    %v548 = vmul.f32 %v532, %v420
    %v549 = vmul.f32 %v533, %v293
    %v550 = vmul.f32 %v534, %v294
    %v551 = vmul.f32 %v535, %v295
    %v552 = vmul.f32 %v536, %v296
    %v553 = vmul.f32 %v537, %v297
    %v554 = vmul.f32 %v538, %v298
    %v555 = vmul.f32 %v539, %v299
    %v556 = vmul.f32 %v540, %v300
    %v557 = vmul.f32 %v541, %v301
    %v558 = vmul.f32 %v542, %v302
    %v559 = vmul.f32 %v543, %v303
    %v560 = vmul.f32 %v544, %v304
    %v561 = vmul.f32 %v545, %v305
    %v562 = vmul.f32 %v546, %v306
    %v563 = vmul.f32 %v547, %v307
    %v564 = vmul.f32 %v548, %v308
    %v565 = vld [vmem:[%s3] sm:$0xff]
    %v566 = vld [vmem:[%s3 + $0x8] sm:$0xff]
    %v567 = vld [vmem:[%s3 + $0x10] sm:$0xff]
    %v568 = vld [vmem:[%s3 + $0x18] sm:$0xff]
    %v569 = vlaneseq
    %v570 = vshrl.u32 %v569, 7
    %v571 = vsub.s32 3, %v570
    %v572 = vrot.slane %v191, %v571
    %v573 = vlaneseq
    %v574 = vshrl.u32 %v573, 7
    %v575 = vsub.s32 3, %v574
    %v576 = vrot.slane %v192, %v575
    %vm577 = vcmp.eq.s32.totalorder %v175, %v572
    %vm578 = vcmp.eq.s32.totalorder %v175, %v576
    %vm579 = vcmp.eq.s32.totalorder %v176, %v572
    %vm580 = vcmp.eq.s32.totalorder %v176, %v576
    %vm581 = vcmp.eq.s32.totalorder %v177, %v572
    %vm582 = vcmp.eq.s32.totalorder %v177, %v576
    %vm583 = vcmp.eq.s32.totalorder %v178, %v572
    %vm584 = vcmp.eq.s32.totalorder %v178, %v576
    %vm585 = vcmp.eq.s32.totalorder %v179, %v572
    %vm586 = vcmp.eq.s32.totalorder %v179, %v576
    %vm587 = vcmp.eq.s32.totalorder %v180, %v572
    %vm588 = vcmp.eq.s32.totalorder %v180, %v576
    %vm589 = vcmp.eq.s32.totalorder %v181, %v572
    %vm590 = vcmp.eq.s32.totalorder %v181, %v576
    %vm591 = vcmp.eq.s32.totalorder %v182, %v572
    %vm592 = vcmp.eq.s32.totalorder %v182, %v576
    %v593 = vlaneseq
    %v594 = vshrl.u32 %v593, 7
    %v595 = vsub.s32 3, %v594
    %v596 = vrot.slane %v217, %v595
    %v597 = vlaneseq
    %v598 = vshrl.u32 %v597, 7
    %v599 = vsub.s32 3, %v598
    %v600 = vrot.slane %v218, %v599
    %v601 = vsel %vm577, %v596, 0.0
    %v602 = vsel %vm578, %v600, 0.0
    %v603 = vsel %vm579, %v596, 0.0
    %v604 = vsel %vm580, %v600, 0.0
    %v605 = vsel %vm581, %v596, 0.0
    %v606 = vsel %vm582, %v600, 0.0
    %v607 = vsel %vm583, %v596, 0.0
    %v608 = vsel %vm584, %v600, 0.0
    %v609 = vsel %vm585, %v596, 0.0
    %v610 = vsel %vm586, %v600, 0.0
    %v611 = vsel %vm587, %v596, 0.0
    %v612 = vsel %vm588, %v600, 0.0
    %v613 = vsel %vm589, %v596, 0.0
    %v614 = vsel %vm590, %v600, 0.0
    %v615 = vsel %vm591, %v596, 0.0
    %v616 = vsel %vm592, %v600, 0.0
    %v617 = vlaneseq
    %v618 = vshrl.u32 %v617, 7
    %v619 = vsub.s32 3, %v618
    %v620 = vrot.slane %v243, %v619
    %v621 = vlaneseq
    %v622 = vshrl.u32 %v621, 7
    %v623 = vsub.s32 3, %v622
    %v624 = vrot.slane %v244, %v623
    %vm625 = vcmp.eq.s32.totalorder %v175, %v620
    %vm626 = vcmp.eq.s32.totalorder %v175, %v624
    %vm627 = vcmp.eq.s32.totalorder %v176, %v620
    %vm628 = vcmp.eq.s32.totalorder %v176, %v624
    %vm629 = vcmp.eq.s32.totalorder %v177, %v620
    %vm630 = vcmp.eq.s32.totalorder %v177, %v624
    %vm631 = vcmp.eq.s32.totalorder %v178, %v620
    %vm632 = vcmp.eq.s32.totalorder %v178, %v624
    %vm633 = vcmp.eq.s32.totalorder %v179, %v620
    %vm634 = vcmp.eq.s32.totalorder %v179, %v624
    %vm635 = vcmp.eq.s32.totalorder %v180, %v620
    %vm636 = vcmp.eq.s32.totalorder %v180, %v624
    %vm637 = vcmp.eq.s32.totalorder %v181, %v620
    %vm638 = vcmp.eq.s32.totalorder %v181, %v624
    %vm639 = vcmp.eq.s32.totalorder %v182, %v620
    %vm640 = vcmp.eq.s32.totalorder %v182, %v624
    %v641 = vlaneseq
    %v642 = vshrl.u32 %v641, 7
    %v643 = vsub.s32 3, %v642
    %v644 = vrot.slane %v189, %v643
    %v645 = vlaneseq
    %v646 = vshrl.u32 %v645, 7
    %v647 = vsub.s32 3, %v646
    %v648 = vrot.slane %v190, %v647
    %v649 = vsel %vm625, %v644, 0.0
    %v650 = vsel %vm626, %v648, 0.0
    %v651 = vsel %vm627, %v644, 0.0
    %v652 = vsel %vm628, %v648, 0.0
    %v653 = vsel %vm629, %v644, 0.0
    %v654 = vsel %vm630, %v648, 0.0
    %v655 = vsel %vm631, %v644, 0.0
    %v656 = vsel %vm632, %v648, 0.0
    %v657 = vsel %vm633, %v644, 0.0
    %v658 = vsel %vm634, %v648, 0.0
    %v659 = vsel %vm635, %v644, 0.0
    %v660 = vsel %vm636, %v648, 0.0
    %v661 = vsel %vm637, %v644, 0.0
    %v662 = vsel %vm638, %v648, 0.0
    %v663 = vsel %vm639, %v644, 0.0
    %v664 = vsel %vm640, %v648, 0.0
    %v665 = vadd.f32 %v601, %v649
    %v666 = vadd.f32 %v602, %v650
    %v667 = vadd.f32 %v603, %v651
    %v668 = vadd.f32 %v604, %v652
    %v669 = vadd.f32 %v605, %v653
    %v670 = vadd.f32 %v606, %v654
    %v671 = vadd.f32 %v607, %v655
    %v672 = vadd.f32 %v608, %v656
    %v673 = vadd.f32 %v609, %v657
    %v674 = vadd.f32 %v610, %v658
    %v675 = vadd.f32 %v611, %v659
    %v676 = vadd.f32 %v612, %v660
    %v677 = vadd.f32 %v613, %v661
    %v678 = vadd.f32 %v614, %v662
    %v679 = vadd.f32 %v615, %v663
    %v680 = vadd.f32 %v616, %v664
    %v681 = vlaneseq
    %v682 = vshrl.u32 %v681, 7
    %v683 = vsub.s32 4, %v682
    %v684 = vrot.slane %v191, %v683
    %v685 = vlaneseq
    %v686 = vshrl.u32 %v685, 7
    %v687 = vsub.s32 4, %v686
    %v688 = vrot.slane %v192, %v687
    %vm689 = vcmp.eq.s32.totalorder %v167, %v684
    %vm690 = vcmp.eq.s32.totalorder %v167, %v688
    %vm691 = vcmp.eq.s32.totalorder %v168, %v684
    %vm692 = vcmp.eq.s32.totalorder %v168, %v688
    %vm693 = vcmp.eq.s32.totalorder %v169, %v684
    %vm694 = vcmp.eq.s32.totalorder %v169, %v688
    %vm695 = vcmp.eq.s32.totalorder %v170, %v684
    %vm696 = vcmp.eq.s32.totalorder %v170, %v688
    %vm697 = vcmp.eq.s32.totalorder %v171, %v684
    %vm698 = vcmp.eq.s32.totalorder %v171, %v688
    %vm699 = vcmp.eq.s32.totalorder %v172, %v684
    %vm700 = vcmp.eq.s32.totalorder %v172, %v688
    %vm701 = vcmp.eq.s32.totalorder %v173, %v684
    %vm702 = vcmp.eq.s32.totalorder %v173, %v688
    %vm703 = vcmp.eq.s32.totalorder %v174, %v684
    %vm704 = vcmp.eq.s32.totalorder %v174, %v688
    %v705 = vlaneseq
    %v706 = vshrl.u32 %v705, 7
    %v707 = vsub.s32 4, %v706
    %v708 = vrot.slane %v217, %v707
    %v709 = vlaneseq
    %v710 = vshrl.u32 %v709, 7
    %v711 = vsub.s32 4, %v710
    %v712 = vrot.slane %v218, %v711
    %v713 = vsel %vm689, %v708, 0.0
    %v714 = vsel %vm690, %v712, 0.0
    %v715 = vsel %vm691, %v708, 0.0
    %v716 = vsel %vm692, %v712, 0.0
    %v717 = vsel %vm693, %v708, 0.0
    %v718 = vsel %vm694, %v712, 0.0
    %v719 = vsel %vm695, %v708, 0.0
    %v720 = vsel %vm696, %v712, 0.0
    %v721 = vsel %vm697, %v708, 0.0
    %v722 = vsel %vm698, %v712, 0.0
    %v723 = vsel %vm699, %v708, 0.0
    %v724 = vsel %vm700, %v712, 0.0
    %v725 = vsel %vm701, %v708, 0.0
    %v726 = vsel %vm702, %v712, 0.0
    %v727 = vsel %vm703, %v708, 0.0
    %v728 = vsel %vm704, %v712, 0.0
    %v729 = vlaneseq
    %v730 = vshrl.u32 %v729, 7
    %v731 = vsub.s32 4, %v730
    %v732 = vrot.slane %v243, %v731
    %v733 = vlaneseq
    %v734 = vshrl.u32 %v733, 7
    %v735 = vsub.s32 4, %v734
    %v736 = vrot.slane %v244, %v735
    %vm737 = vcmp.eq.s32.totalorder %v167, %v732
    %vm738 = vcmp.eq.s32.totalorder %v167, %v736
    %vm739 = vcmp.eq.s32.totalorder %v168, %v732
    %vm740 = vcmp.eq.s32.totalorder %v168, %v736
    %vm741 = vcmp.eq.s32.totalorder %v169, %v732
    %vm742 = vcmp.eq.s32.totalorder %v169, %v736
    %vm743 = vcmp.eq.s32.totalorder %v170, %v732
    %vm744 = vcmp.eq.s32.totalorder %v170, %v736
    %vm745 = vcmp.eq.s32.totalorder %v171, %v732
    %vm746 = vcmp.eq.s32.totalorder %v171, %v736
    %vm747 = vcmp.eq.s32.totalorder %v172, %v732
    %vm748 = vcmp.eq.s32.totalorder %v172, %v736
    %vm749 = vcmp.eq.s32.totalorder %v173, %v732
    %vm750 = vcmp.eq.s32.totalorder %v173, %v736
    %vm751 = vcmp.eq.s32.totalorder %v174, %v732
    %vm752 = vcmp.eq.s32.totalorder %v174, %v736
    %v753 = vlaneseq
    %v754 = vshrl.u32 %v753, 7
    %v755 = vsub.s32 4, %v754
    %v756 = vrot.slane %v189, %v755
    %v757 = vlaneseq
    %v758 = vshrl.u32 %v757, 7
    %v759 = vsub.s32 4, %v758
    %v760 = vrot.slane %v190, %v759
    %v761 = vsel %vm737, %v756, 0.0
    %v762 = vsel %vm738, %v760, 0.0
    %v763 = vsel %vm739, %v756, 0.0
    %v764 = vsel %vm740, %v760, 0.0
    %v765 = vsel %vm741, %v756, 0.0
    %v766 = vsel %vm742, %v760, 0.0
    %v767 = vsel %vm743, %v756, 0.0
    %v768 = vsel %vm744, %v760, 0.0
    %v769 = vsel %vm745, %v756, 0.0
    %v770 = vsel %vm746, %v760, 0.0
    %v771 = vsel %vm747, %v756, 0.0
    %v772 = vsel %vm748, %v760, 0.0
    %v773 = vsel %vm749, %v756, 0.0
    %v774 = vsel %vm750, %v760, 0.0
    %v775 = vsel %vm751, %v756, 0.0
    %v776 = vsel %vm752, %v760, 0.0
    %v777 = vadd.f32 %v713, %v761
    %v778 = vadd.f32 %v714, %v762
    %v779 = vadd.f32 %v715, %v763
    %v780 = vadd.f32 %v716, %v764
    %v781 = vadd.f32 %v717, %v765
    %v782 = vadd.f32 %v718, %v766
    %v783 = vadd.f32 %v719, %v767
    %v784 = vadd.f32 %v720, %v768
    %v785 = vadd.f32 %v721, %v769
    %v786 = vadd.f32 %v722, %v770
    %v787 = vadd.f32 %v723, %v771
    %v788 = vadd.f32 %v724, %v772
    %v789 = vadd.f32 %v725, %v773
    %v790 = vadd.f32 %v726, %v774
    %v791 = vadd.f32 %v727, %v775
    %v792 = vadd.f32 %v728, %v776
    %v793 = vlaneseq
    %v794 = vshrl.u32 %v793, 7
    %v795 = vsub.s32 5, %v794
    %v796 = vrot.slane %v191, %v795
    %v797 = vlaneseq
    %v798 = vshrl.u32 %v797, 7
    %v799 = vsub.s32 5, %v798
    %v800 = vrot.slane %v192, %v799
    %vm801 = vcmp.eq.s32.totalorder %v151, %v796
    %vm802 = vcmp.eq.s32.totalorder %v151, %v800
    %vm803 = vcmp.eq.s32.totalorder %v152, %v796
    %vm804 = vcmp.eq.s32.totalorder %v152, %v800
    %vm805 = vcmp.eq.s32.totalorder %v153, %v796
    %vm806 = vcmp.eq.s32.totalorder %v153, %v800
    %vm807 = vcmp.eq.s32.totalorder %v154, %v796
    %vm808 = vcmp.eq.s32.totalorder %v154, %v800
    %vm809 = vcmp.eq.s32.totalorder %v155, %v796
    %vm810 = vcmp.eq.s32.totalorder %v155, %v800
    %vm811 = vcmp.eq.s32.totalorder %v156, %v796
    %vm812 = vcmp.eq.s32.totalorder %v156, %v800
    %vm813 = vcmp.eq.s32.totalorder %v157, %v796
    %vm814 = vcmp.eq.s32.totalorder %v157, %v800
    %vm815 = vcmp.eq.s32.totalorder %v158, %v796
    %vm816 = vcmp.eq.s32.totalorder %v158, %v800
    %v817 = vlaneseq
    %v818 = vshrl.u32 %v817, 7
    %v819 = vsub.s32 5, %v818
    %v820 = vrot.slane %v217, %v819
    %v821 = vlaneseq
    %v822 = vshrl.u32 %v821, 7
    %v823 = vsub.s32 5, %v822
    %v824 = vrot.slane %v218, %v823
    %v825 = vsel %vm801, %v820, 0.0
    %v826 = vsel %vm802, %v824, 0.0
    %v827 = vsel %vm803, %v820, 0.0
    %v828 = vsel %vm804, %v824, 0.0
    %v829 = vsel %vm805, %v820, 0.0
    %v830 = vsel %vm806, %v824, 0.0
    %v831 = vsel %vm807, %v820, 0.0
    %v832 = vsel %vm808, %v824, 0.0
    %v833 = vsel %vm809, %v820, 0.0
    %v834 = vsel %vm810, %v824, 0.0
    %v835 = vsel %vm811, %v820, 0.0
    %v836 = vsel %vm812, %v824, 0.0
    %v837 = vsel %vm813, %v820, 0.0
    %v838 = vsel %vm814, %v824, 0.0
    %v839 = vsel %vm815, %v820, 0.0
    %v840 = vsel %vm816, %v824, 0.0
    %v841 = vlaneseq
    %v842 = vshrl.u32 %v841, 7
    %v843 = vsub.s32 5, %v842
    %v844 = vrot.slane %v243, %v843
    %v845 = vlaneseq
    %v846 = vshrl.u32 %v845, 7
    %v847 = vsub.s32 5, %v846
    %v848 = vrot.slane %v244, %v847
    %vm849 = vcmp.eq.s32.totalorder %v151, %v844
    %vm850 = vcmp.eq.s32.totalorder %v151, %v848
    %vm851 = vcmp.eq.s32.totalorder %v152, %v844
    %vm852 = vcmp.eq.s32.totalorder %v152, %v848
    %vm853 = vcmp.eq.s32.totalorder %v153, %v844
    %vm854 = vcmp.eq.s32.totalorder %v153, %v848
    %vm855 = vcmp.eq.s32.totalorder %v154, %v844
    %vm856 = vcmp.eq.s32.totalorder %v154, %v848
    %vm857 = vcmp.eq.s32.totalorder %v155, %v844
    %vm858 = vcmp.eq.s32.totalorder %v155, %v848
    %vm859 = vcmp.eq.s32.totalorder %v156, %v844
    %vm860 = vcmp.eq.s32.totalorder %v156, %v848
    %vm861 = vcmp.eq.s32.totalorder %v157, %v844
    %vm862 = vcmp.eq.s32.totalorder %v157, %v848
    %vm863 = vcmp.eq.s32.totalorder %v158, %v844
    %vm864 = vcmp.eq.s32.totalorder %v158, %v848
    %v865 = vlaneseq
    %v866 = vshrl.u32 %v865, 7
    %v867 = vsub.s32 5, %v866
    %v868 = vrot.slane %v189, %v867
    %v869 = vlaneseq
    %v870 = vshrl.u32 %v869, 7
    %v871 = vsub.s32 5, %v870
    %v872 = vrot.slane %v190, %v871
    %v873 = vsel %vm849, %v868, 0.0
    %v874 = vsel %vm850, %v872, 0.0
    %v875 = vsel %vm851, %v868, 0.0
    %v876 = vsel %vm852, %v872, 0.0
    %v877 = vsel %vm853, %v868, 0.0
    %v878 = vsel %vm854, %v872, 0.0
    %v879 = vsel %vm855, %v868, 0.0
    %v880 = vsel %vm856, %v872, 0.0
    %v881 = vsel %vm857, %v868, 0.0
    %v882 = vsel %vm858, %v872, 0.0
    %v883 = vsel %vm859, %v868, 0.0
    %v884 = vsel %vm860, %v872, 0.0
    %v885 = vsel %vm861, %v868, 0.0
    %v886 = vsel %vm862, %v872, 0.0
    %v887 = vsel %vm863, %v868, 0.0
    %v888 = vsel %vm864, %v872, 0.0
    %v889 = vadd.f32 %v825, %v873
    %v890 = vadd.f32 %v826, %v874
    %v891 = vadd.f32 %v827, %v875
    %v892 = vadd.f32 %v828, %v876
    %v893 = vadd.f32 %v829, %v877
    %v894 = vadd.f32 %v830, %v878
    %v895 = vadd.f32 %v831, %v879
    %v896 = vadd.f32 %v832, %v880
    %v897 = vadd.f32 %v833, %v881
    %v898 = vadd.f32 %v834, %v882
    %v899 = vadd.f32 %v835, %v883
    %v900 = vadd.f32 %v836, %v884
    %v901 = vadd.f32 %v837, %v885
    %v902 = vadd.f32 %v838, %v886
    %v903 = vadd.f32 %v839, %v887
    %v904 = vadd.f32 %v840, %v888
    %v905 = vmul.f32 %v889, %v777
    %v906 = vmul.f32 %v890, %v778
    %v907 = vmul.f32 %v891, %v779
    %v908 = vmul.f32 %v892, %v780
    %v909 = vmul.f32 %v893, %v781
    %v910 = vmul.f32 %v894, %v782
    %v911 = vmul.f32 %v895, %v783
    %v912 = vmul.f32 %v896, %v784
    %v913 = vmul.f32 %v897, %v785
    %v914 = vmul.f32 %v898, %v786
    %v915 = vmul.f32 %v899, %v787
    %v916 = vmul.f32 %v900, %v788
    %v917 = vmul.f32 %v901, %v789
    %v918 = vmul.f32 %v902, %v790
    %v919 = vmul.f32 %v903, %v791
    %v920 = vmul.f32 %v904, %v792
    %v921 = vmul.f32 %v905, %v665
    %v922 = vmul.f32 %v906, %v666
    %v923 = vmul.f32 %v907, %v667
    %v924 = vmul.f32 %v908, %v668
    %v925 = vmul.f32 %v909, %v669
    %v926 = vmul.f32 %v910, %v670
    %v927 = vmul.f32 %v911, %v671
    %v928 = vmul.f32 %v912, %v672
    %v929 = vmul.f32 %v913, %v673
    %v930 = vmul.f32 %v914, %v674
    %v931 = vmul.f32 %v915, %v675
    %v932 = vmul.f32 %v916, %v676
    %v933 = vmul.f32 %v917, %v677
    %v934 = vmul.f32 %v918, %v678
    %v935 = vmul.f32 %v919, %v679
    %v936 = vmul.f32 %v920, %v680
    %s937 = scalar_lea.vmem %s3, 32
    %v938 = vld [vmem:[%s937] sm:$0xff]
    %v939 = vld [vmem:[%s937 + $0x8] sm:$0xff]
    %v940 = vld [vmem:[%s937 + $0x10] sm:$0xff]
    %v941 = vld [vmem:[%s937 + $0x18] sm:$0xff]
    %vm942 = vcmask 523264
    %v944 = vsel %vm942, %v938, 0
    %v947 = vsel %vm942, %v939, 0
    %v950 = vsel %vm942, %v940, 0
    %v953 = vsel %vm942, %v941, 0
    %955 = vmatprep.subr.mxu0 %v922
    %956 = vmatpush1.msra.mxu0 %v921
    %957 = vmatprep.subr.mxu0 %v924
    %958 = vmatpush1.msra.mxu0 %v923
    %959 = vmatprep.subr.mxu0 %v926
    %960 = vmatpush1.msra.mxu0 %v925
    %961 = vmatprep.subr.mxu0 %v928
    %962 = vmatpush1.msra.mxu0 %v927
    %963 = vmatprep.subr.mxu0 %v930
    %964 = vmatpush1.msra.mxu0 %v929
    %965 = vmatprep.subr.mxu0 %v932
    %966 = vmatpush1.msra.mxu0 %v931
    %967 = vmatprep.subr.mxu0 %v934
    %968 = vmatpush1.msra.mxu0 %v933
    %969 = vmatprep.subr.mxu0 %v936
    %970 = vmatpush1.msra.mxu0 %v935
    %971 = vmatprep.subr.mxu0 0.0
    %972 = vmatpush1.msra.mxu0 0.0
    %973 = vmatprep.subr.mxu0 0.0
    %974 = vmatpush1.msra.mxu0 0.0
    %975 = vmatprep.subr.mxu0 0.0
    %976 = vmatpush1.msra.mxu0 0.0
    %977 = vmatprep.subr.mxu0 0.0
    %978 = vmatpush1.msra.mxu0 0.0
    %979 = vmatprep.subr.mxu0 0.0
    %980 = vmatpush1.msra.mxu0 0.0
    %981 = vmatprep.subr.mxu0 0.0
    %982 = vmatpush1.msra.mxu0 0.0
    %983 = vmatprep.subr.mxu0 0.0
    %984 = vmatpush1.msra.mxu0 0.0
    %985 = vmatprep.subr.mxu0 0.0
    %986 = vmatpush1.msra.mxu0 0.0
    %987 = vmatprep.subr.mxu0 0.0
    %988 = vmatpush1.msra.mxu0 0.0
    %989 = vmatprep.subr.mxu0 0.0
    %990 = vmatpush1.msra.mxu0 0.0
    %991 = vmatprep.subr.mxu0 0.0
    %992 = vmatpush1.msra.mxu0 0.0
    %993 = vmatprep.subr.mxu0 0.0
    %994 = vmatpush1.msra.mxu0 0.0
    %995 = vmatprep.subr.mxu0 0.0
    %996 = vmatpush1.msra.mxu0 0.0
    %997 = vmatprep.subr.mxu0 0.0
    %998 = vmatpush1.msra.mxu0 0.0
    %999 = vmatprep.subr.mxu0 0.0
    %1000 = vmatpush1.msra.mxu0 0.0
    %1001 = vmatprep.subr.mxu0 0.0
    %1002 = vmatpush1.msra.mxu0 0.0
    %1003 = vmatprep.subr.mxu0 0.0
    %1004 = vmatpush1.msra.mxu0 0.0
    %1005 = vmatprep.subr.mxu0 0.0
    %1006 = vmatpush1.msra.mxu0 0.0
    %1007 = vmatprep.subr.mxu0 0.0
    %1008 = vmatpush1.msra.mxu0 0.0
    %1009 = vmatprep.subr.mxu0 0.0
    %1010 = vmatpush1.msra.mxu0 0.0
    %1011 = vmatprep.subr.mxu0 0.0
    %1012 = vmatpush1.msra.mxu0 0.0
    %1013 = vmatprep.subr.mxu0 0.0
    %1014 = vmatpush1.msra.mxu0 0.0
    %1015 = vmatprep.subr.mxu0 0.0
    %1016 = vmatpush1.msra.mxu0 0.0
    %1017 = vmatprep.subr.mxu0 0.0
    %1018 = vmatpush1.msra.mxu0 0.0
    %1019 = vmatprep.mubr.f32.mxu0 0.0
    %1020 = vmatmul.mubr.f32.gmra.mrb[0].mxu0 %v944
    %v1021 = vpop.f32.mrb[0].mxu0
    %v1022 = vadd.f32 0.0, %v1021
    %v1023 = vpop.f32.mrb[0].mxu0
    %v1024 = vadd.f32 0.0, %v1023
    %1025 = vmatprep.mubr.f32.mxu0 0.0
    %1026 = vmatmul.mubr.f32.gmra.mrb[0].mxu0 %v947
    %v1027 = vpop.f32.mrb[0].mxu0
    %v1028 = vadd.f32 0.0, %v1027
    %v1029 = vpop.f32.mrb[0].mxu0
    %v1030 = vadd.f32 0.0, %v1029
    %1031 = vmatprep.mubr.f32.mxu0 0.0
    %1032 = vmatmul.mubr.f32.gmra.mrb[0].mxu0 %v950
    %v1033 = vpop.f32.mrb[0].mxu0
    %v1034 = vadd.f32 0.0, %v1033
    %v1035 = vpop.f32.mrb[0].mxu0
    %v1036 = vadd.f32 0.0, %v1035
    %1037 = vmatprep.mubr.f32.mxu0 0.0
    %1038 = vmatmul.mubr.f32.gmra.mrb[0].mxu0 %v953
    %v1039 = vpop.f32.mrb[0].mxu0
    %v1040 = vadd.f32 0.0, %v1039
    %v1041 = vpop.f32.mrb[0].mxu0
    %v1042 = vadd.f32 0.0, %v1041
    %1043 = vdwg.mxu0
    %v1045 = vsel %vm942, %v565, 0
    %v1048 = vsel %vm942, %v566, 0
    %v1051 = vsel %vm942, %v567, 0
    %v1054 = vsel %vm942, %v568, 0
    %1056 = vmatprep.subr.mxu0 %v550
    %1057 = vmatpush1.msra.mxu0 %v549
    %1058 = vmatprep.subr.mxu0 %v552
    %1059 = vmatpush1.msra.mxu0 %v551
    %1060 = vmatprep.subr.mxu0 %v554
    %1061 = vmatpush1.msra.mxu0 %v553
    %1062 = vmatprep.subr.mxu0 %v556
    %1063 = vmatpush1.msra.mxu0 %v555
    %1064 = vmatprep.subr.mxu0 %v558
    %1065 = vmatpush1.msra.mxu0 %v557
    %1066 = vmatprep.subr.mxu0 %v560
    %1067 = vmatpush1.msra.mxu0 %v559
    %1068 = vmatprep.subr.mxu0 %v562
    %1069 = vmatpush1.msra.mxu0 %v561
    %1070 = vmatprep.subr.mxu0 %v564
    %1071 = vmatpush1.msra.mxu0 %v563
    %1072 = vmatprep.subr.mxu0 0.0
    %1073 = vmatpush1.msra.mxu0 0.0
    %1074 = vmatprep.subr.mxu0 0.0
    %1075 = vmatpush1.msra.mxu0 0.0
    %1076 = vmatprep.subr.mxu0 0.0
    %1077 = vmatpush1.msra.mxu0 0.0
    %1078 = vmatprep.subr.mxu0 0.0
    %1079 = vmatpush1.msra.mxu0 0.0
    %1080 = vmatprep.subr.mxu0 0.0
    %1081 = vmatpush1.msra.mxu0 0.0
    %1082 = vmatprep.subr.mxu0 0.0
    %1083 = vmatpush1.msra.mxu0 0.0
    %1084 = vmatprep.subr.mxu0 0.0
    %1085 = vmatpush1.msra.mxu0 0.0
    %1086 = vmatprep.subr.mxu0 0.0
    %1087 = vmatpush1.msra.mxu0 0.0
    %1088 = vmatprep.subr.mxu0 0.0
    %1089 = vmatpush1.msra.mxu0 0.0
    %1090 = vmatprep.subr.mxu0 0.0
    %1091 = vmatpush1.msra.mxu0 0.0
    %1092 = vmatprep.subr.mxu0 0.0
    %1093 = vmatpush1.msra.mxu0 0.0
    %1094 = vmatprep.subr.mxu0 0.0
    %1095 = vmatpush1.msra.mxu0 0.0
    %1096 = vmatprep.subr.mxu0 0.0
    %1097 = vmatpush1.msra.mxu0 0.0
    %1098 = vmatprep.subr.mxu0 0.0
    %1099 = vmatpush1.msra.mxu0 0.0
    %1100 = vmatprep.subr.mxu0 0.0
    %1101 = vmatpush1.msra.mxu0 0.0
    %1102 = vmatprep.subr.mxu0 0.0
    %1103 = vmatpush1.msra.mxu0 0.0
    %1104 = vmatprep.subr.mxu0 0.0
    %1105 = vmatpush1.msra.mxu0 0.0
    %1106 = vmatprep.subr.mxu0 0.0
    %1107 = vmatpush1.msra.mxu0 0.0
    %1108 = vmatprep.subr.mxu0 0.0
    %1109 = vmatpush1.msra.mxu0 0.0
    %1110 = vmatprep.subr.mxu0 0.0
    %1111 = vmatpush1.msra.mxu0 0.0
    %1112 = vmatprep.subr.mxu0 0.0
    %1113 = vmatpush1.msra.mxu0 0.0
    %1114 = vmatprep.subr.mxu0 0.0
    %1115 = vmatpush1.msra.mxu0 0.0
    %1116 = vmatprep.subr.mxu0 0.0
    %1117 = vmatpush1.msra.mxu0 0.0
    %1118 = vmatprep.subr.mxu0 0.0
    %1119 = vmatpush1.msra.mxu0 0.0
    %1120 = vmatprep.mubr.f32.mxu0 0.0
    %1121 = vmatmul.mubr.f32.gmra.mrb[0].mxu0 %v1045
    %v1122 = vpop.f32.mrb[0].mxu0
    %v1123 = vadd.f32 %v1022, %v1122
    %v1124 = vpop.f32.mrb[0].mxu0
    %v1125 = vadd.f32 %v1024, %v1124
    %1126 = vmatprep.mubr.f32.mxu0 0.0
    %1127 = vmatmul.mubr.f32.gmra.mrb[0].mxu0 %v1048
    %v1128 = vpop.f32.mrb[0].mxu0
    %v1129 = vadd.f32 %v1028, %v1128
    %v1130 = vpop.f32.mrb[0].mxu0
    %v1131 = vadd.f32 %v1030, %v1130
    %1132 = vmatprep.mubr.f32.mxu0 0.0
    %1133 = vmatmul.mubr.f32.gmra.mrb[0].mxu0 %v1051
    %v1134 = vpop.f32.mrb[0].mxu0
    %v1135 = vadd.f32 %v1034, %v1134
    %v1136 = vpop.f32.mrb[0].mxu0
    %v1137 = vadd.f32 %v1036, %v1136
    %1138 = vmatprep.mubr.f32.mxu0 0.0
    %1139 = vmatmul.mubr.f32.gmra.mrb[0].mxu0 %v1054
    %v1140 = vpop.f32.mrb[0].mxu0
    %v1141 = vadd.f32 %v1040, %v1140
    %v1142 = vpop.f32.mrb[0].mxu0
    %v1143 = vadd.f32 %v1042, %v1142
    %1144 = vdwg.mxu0
    %v1145 = vadd.f32 %v140, 1.0
    %v1146 = vadd.f32 %v141, 1.0
    %v1147 = vmul.f32 %v1145, 1.5
    %v1148 = vmul.f32 %v1146, 1.5
    %v1149 = vfloor.f32 %v1147
    %v1150 = vfloor.f32 %v1148
    %v1151 = vsub.f32 %v1147, %v1149
    %v1152 = vsub.f32 %v1148, %v1150
    %v1153 = vcvt.f32.s32.to.zero.pseudo %v1149
    %v1154 = vcvt.f32.s32.to.zero.pseudo %v1150
    %v1155 = vlaneseq
    %v1156 = vshrl.u32 %v1155, 7
    %v1157 = vsub.s32 6, %v1156
    %v1158 = vrot.slane %v191, %v1157
    %v1159 = vlaneseq
    %v1160 = vshrl.u32 %v1159, 7
    %v1161 = vsub.s32 6, %v1160
    %v1162 = vrot.slane %v192, %v1161
    %vm1163 = vcmp.eq.s32.totalorder %v175, %v1158
    %vm1164 = vcmp.eq.s32.totalorder %v175, %v1162
    %vm1165 = vcmp.eq.s32.totalorder %v176, %v1158
    %vm1166 = vcmp.eq.s32.totalorder %v176, %v1162
    %vm1167 = vcmp.eq.s32.totalorder %v177, %v1158
    %vm1168 = vcmp.eq.s32.totalorder %v177, %v1162
    %vm1169 = vcmp.eq.s32.totalorder %v178, %v1158
    %vm1170 = vcmp.eq.s32.totalorder %v178, %v1162
    %vm1171 = vcmp.eq.s32.totalorder %v179, %v1158
    %vm1172 = vcmp.eq.s32.totalorder %v179, %v1162
    %vm1173 = vcmp.eq.s32.totalorder %v180, %v1158
    %vm1174 = vcmp.eq.s32.totalorder %v180, %v1162
    %vm1175 = vcmp.eq.s32.totalorder %v181, %v1158
    %vm1176 = vcmp.eq.s32.totalorder %v181, %v1162
    %vm1177 = vcmp.eq.s32.totalorder %v182, %v1158
    %vm1178 = vcmp.eq.s32.totalorder %v182, %v1162
    %v1179 = vlaneseq
    %v1180 = vshrl.u32 %v1179, 7
    %v1181 = vsub.s32 6, %v1180
    %v1182 = vrot.slane %v217, %v1181
    %v1183 = vlaneseq
    %v1184 = vshrl.u32 %v1183, 7
    %v1185 = vsub.s32 6, %v1184
    %v1186 = vrot.slane %v218, %v1185
    %v1187 = vsel %vm1163, %v1182, 0.0
    %v1188 = vsel %vm1164, %v1186, 0.0
    %v1189 = vsel %vm1165, %v1182, 0.0
    %v1190 = vsel %vm1166, %v1186, 0.0
    %v1191 = vsel %vm1167, %v1182, 0.0
    %v1192 = vsel %vm1168, %v1186, 0.0
    %v1193 = vsel %vm1169, %v1182, 0.0
    %v1194 = vsel %vm1170, %v1186, 0.0
    %v1195 = vsel %vm1171, %v1182, 0.0
    %v1196 = vsel %vm1172, %v1186, 0.0
    %v1197 = vsel %vm1173, %v1182, 0.0
    %v1198 = vsel %vm1174, %v1186, 0.0
    %v1199 = vsel %vm1175, %v1182, 0.0
    %v1200 = vsel %vm1176, %v1186, 0.0
    %v1201 = vsel %vm1177, %v1182, 0.0
    %v1202 = vsel %vm1178, %v1186, 0.0
    %v1203 = vlaneseq
    %v1204 = vshrl.u32 %v1203, 7
    %v1205 = vsub.s32 6, %v1204
    %v1206 = vrot.slane %v243, %v1205
    %v1207 = vlaneseq
    %v1208 = vshrl.u32 %v1207, 7
    %v1209 = vsub.s32 6, %v1208
    %v1210 = vrot.slane %v244, %v1209
    %vm1211 = vcmp.eq.s32.totalorder %v175, %v1206
    %vm1212 = vcmp.eq.s32.totalorder %v175, %v1210
    %vm1213 = vcmp.eq.s32.totalorder %v176, %v1206
    %vm1214 = vcmp.eq.s32.totalorder %v176, %v1210
    %vm1215 = vcmp.eq.s32.totalorder %v177, %v1206
    %vm1216 = vcmp.eq.s32.totalorder %v177, %v1210
    %vm1217 = vcmp.eq.s32.totalorder %v178, %v1206
    %vm1218 = vcmp.eq.s32.totalorder %v178, %v1210
    %vm1219 = vcmp.eq.s32.totalorder %v179, %v1206
    %vm1220 = vcmp.eq.s32.totalorder %v179, %v1210
    %vm1221 = vcmp.eq.s32.totalorder %v180, %v1206
    %vm1222 = vcmp.eq.s32.totalorder %v180, %v1210
    %vm1223 = vcmp.eq.s32.totalorder %v181, %v1206
    %vm1224 = vcmp.eq.s32.totalorder %v181, %v1210
    %vm1225 = vcmp.eq.s32.totalorder %v182, %v1206
    %vm1226 = vcmp.eq.s32.totalorder %v182, %v1210
    %v1227 = vlaneseq
    %v1228 = vshrl.u32 %v1227, 7
    %v1229 = vsub.s32 6, %v1228
    %v1230 = vrot.slane %v189, %v1229
    %v1231 = vlaneseq
    %v1232 = vshrl.u32 %v1231, 7
    %v1233 = vsub.s32 6, %v1232
    %v1234 = vrot.slane %v190, %v1233
    %v1235 = vsel %vm1211, %v1230, 0.0
    %v1236 = vsel %vm1212, %v1234, 0.0
    %v1237 = vsel %vm1213, %v1230, 0.0
    %v1238 = vsel %vm1214, %v1234, 0.0
    %v1239 = vsel %vm1215, %v1230, 0.0
    %v1240 = vsel %vm1216, %v1234, 0.0
    %v1241 = vsel %vm1217, %v1230, 0.0
    %v1242 = vsel %vm1218, %v1234, 0.0
    %v1243 = vsel %vm1219, %v1230, 0.0
    %v1244 = vsel %vm1220, %v1234, 0.0
    %v1245 = vsel %vm1221, %v1230, 0.0
    %v1246 = vsel %vm1222, %v1234, 0.0
    %v1247 = vsel %vm1223, %v1230, 0.0
    %v1248 = vsel %vm1224, %v1234, 0.0
    %v1249 = vsel %vm1225, %v1230, 0.0
    %v1250 = vsel %vm1226, %v1234, 0.0
    %v1251 = vadd.f32 %v1187, %v1235
    %v1252 = vadd.f32 %v1188, %v1236
    %v1253 = vadd.f32 %v1189, %v1237
    %v1254 = vadd.f32 %v1190, %v1238
    %v1255 = vadd.f32 %v1191, %v1239
    %v1256 = vadd.f32 %v1192, %v1240
    %v1257 = vadd.f32 %v1193, %v1241
    %v1258 = vadd.f32 %v1194, %v1242
    %v1259 = vadd.f32 %v1195, %v1243
    %v1260 = vadd.f32 %v1196, %v1244
    %v1261 = vadd.f32 %v1197, %v1245
    %v1262 = vadd.f32 %v1198, %v1246
    %v1263 = vadd.f32 %v1199, %v1247
    %v1264 = vadd.f32 %v1200, %v1248
    %v1265 = vadd.f32 %v1201, %v1249
    %v1266 = vadd.f32 %v1202, %v1250
    %v1267 = vlaneseq
    %v1268 = vshrl.u32 %v1267, 7
    %v1269 = vsub.s32 7, %v1268
    %v1270 = vrot.slane %v191, %v1269
    %v1271 = vlaneseq
    %v1272 = vshrl.u32 %v1271, 7
    %v1273 = vsub.s32 7, %v1272
    %v1274 = vrot.slane %v192, %v1273
    %vm1275 = vcmp.eq.s32.totalorder %v167, %v1270
    %vm1276 = vcmp.eq.s32.totalorder %v167, %v1274
    %vm1277 = vcmp.eq.s32.totalorder %v168, %v1270
    %vm1278 = vcmp.eq.s32.totalorder %v168, %v1274
    %vm1279 = vcmp.eq.s32.totalorder %v169, %v1270
    %vm1280 = vcmp.eq.s32.totalorder %v169, %v1274
    %vm1281 = vcmp.eq.s32.totalorder %v170, %v1270
    %vm1282 = vcmp.eq.s32.totalorder %v170, %v1274
    %vm1283 = vcmp.eq.s32.totalorder %v171, %v1270
    %vm1284 = vcmp.eq.s32.totalorder %v171, %v1274
    %vm1285 = vcmp.eq.s32.totalorder %v172, %v1270
    %vm1286 = vcmp.eq.s32.totalorder %v172, %v1274
    %vm1287 = vcmp.eq.s32.totalorder %v173, %v1270
    %vm1288 = vcmp.eq.s32.totalorder %v173, %v1274
    %vm1289 = vcmp.eq.s32.totalorder %v174, %v1270
    %vm1290 = vcmp.eq.s32.totalorder %v174, %v1274
    %v1291 = vlaneseq
    %v1292 = vshrl.u32 %v1291, 7
    %v1293 = vsub.s32 7, %v1292
    %v1294 = vrot.slane %v217, %v1293
    %v1295 = vlaneseq
    %v1296 = vshrl.u32 %v1295, 7
    %v1297 = vsub.s32 7, %v1296
    %v1298 = vrot.slane %v218, %v1297
    %v1299 = vsel %vm1275, %v1294, 0.0
    %v1300 = vsel %vm1276, %v1298, 0.0
    %v1301 = vsel %vm1277, %v1294, 0.0
    %v1302 = vsel %vm1278, %v1298, 0.0
    %v1303 = vsel %vm1279, %v1294, 0.0
    %v1304 = vsel %vm1280, %v1298, 0.0
    %v1305 = vsel %vm1281, %v1294, 0.0
    %v1306 = vsel %vm1282, %v1298, 0.0
    %v1307 = vsel %vm1283, %v1294, 0.0
    %v1308 = vsel %vm1284, %v1298, 0.0
    %v1309 = vsel %vm1285, %v1294, 0.0
    %v1310 = vsel %vm1286, %v1298, 0.0
    %v1311 = vsel %vm1287, %v1294, 0.0
    %v1312 = vsel %vm1288, %v1298, 0.0
    %v1313 = vsel %vm1289, %v1294, 0.0
    %v1314 = vsel %vm1290, %v1298, 0.0
    %v1315 = vlaneseq
    %v1316 = vshrl.u32 %v1315, 7
    %v1317 = vsub.s32 7, %v1316
    %v1318 = vrot.slane %v243, %v1317
    %v1319 = vlaneseq
    %v1320 = vshrl.u32 %v1319, 7
    %v1321 = vsub.s32 7, %v1320
    %v1322 = vrot.slane %v244, %v1321
    %vm1323 = vcmp.eq.s32.totalorder %v167, %v1318
    %vm1324 = vcmp.eq.s32.totalorder %v167, %v1322
    %vm1325 = vcmp.eq.s32.totalorder %v168, %v1318
    %vm1326 = vcmp.eq.s32.totalorder %v168, %v1322
    %vm1327 = vcmp.eq.s32.totalorder %v169, %v1318
    %vm1328 = vcmp.eq.s32.totalorder %v169, %v1322
    %vm1329 = vcmp.eq.s32.totalorder %v170, %v1318
    %vm1330 = vcmp.eq.s32.totalorder %v170, %v1322
    %vm1331 = vcmp.eq.s32.totalorder %v171, %v1318
    %vm1332 = vcmp.eq.s32.totalorder %v171, %v1322
    %vm1333 = vcmp.eq.s32.totalorder %v172, %v1318
    %vm1334 = vcmp.eq.s32.totalorder %v172, %v1322
    %vm1335 = vcmp.eq.s32.totalorder %v173, %v1318
    %vm1336 = vcmp.eq.s32.totalorder %v173, %v1322
    %vm1337 = vcmp.eq.s32.totalorder %v174, %v1318
    %vm1338 = vcmp.eq.s32.totalorder %v174, %v1322
    %v1339 = vlaneseq
    %v1340 = vshrl.u32 %v1339, 7
    %v1341 = vsub.s32 7, %v1340
    %v1342 = vrot.slane %v189, %v1341
    %v1343 = vlaneseq
    %v1344 = vshrl.u32 %v1343, 7
    %v1345 = vsub.s32 7, %v1344
    %v1346 = vrot.slane %v190, %v1345
    %v1347 = vsel %vm1323, %v1342, 0.0
    %v1348 = vsel %vm1324, %v1346, 0.0
    %v1349 = vsel %vm1325, %v1342, 0.0
    %v1350 = vsel %vm1326, %v1346, 0.0
    %v1351 = vsel %vm1327, %v1342, 0.0
    %v1352 = vsel %vm1328, %v1346, 0.0
    %v1353 = vsel %vm1329, %v1342, 0.0
    %v1354 = vsel %vm1330, %v1346, 0.0
    %v1355 = vsel %vm1331, %v1342, 0.0
    %v1356 = vsel %vm1332, %v1346, 0.0
    %v1357 = vsel %vm1333, %v1342, 0.0
    %v1358 = vsel %vm1334, %v1346, 0.0
    %v1359 = vsel %vm1335, %v1342, 0.0
    %v1360 = vsel %vm1336, %v1346, 0.0
    %v1361 = vsel %vm1337, %v1342, 0.0
    %v1362 = vsel %vm1338, %v1346, 0.0
    %v1363 = vadd.f32 %v1299, %v1347
    %v1364 = vadd.f32 %v1300, %v1348
    %v1365 = vadd.f32 %v1301, %v1349
    %v1366 = vadd.f32 %v1302, %v1350
    %v1367 = vadd.f32 %v1303, %v1351
    %v1368 = vadd.f32 %v1304, %v1352
    %v1369 = vadd.f32 %v1305, %v1353
    %v1370 = vadd.f32 %v1306, %v1354
    %v1371 = vadd.f32 %v1307, %v1355
    %v1372 = vadd.f32 %v1308, %v1356
    %v1373 = vadd.f32 %v1309, %v1357
    %v1374 = vadd.f32 %v1310, %v1358
    %v1375 = vadd.f32 %v1311, %v1359
    %v1376 = vadd.f32 %v1312, %v1360
    %v1377 = vadd.f32 %v1313, %v1361
    %v1378 = vadd.f32 %v1314, %v1362
    %v1379 = vlaneseq
    %v1380 = vshrl.u32 %v1379, 7
    %v1381 = vsub.s32 0, %v1380
    %v1382 = vrot.slane %v1153, %v1381
    %v1383 = vlaneseq
    %v1384 = vshrl.u32 %v1383, 7
    %v1385 = vsub.s32 0, %v1384
    %v1386 = vrot.slane %v1154, %v1385
    %vm1387 = vcmp.eq.s32.totalorder %v151, %v1382
    %vm1388 = vcmp.eq.s32.totalorder %v151, %v1386
    %vm1389 = vcmp.eq.s32.totalorder %v152, %v1382
    %vm1390 = vcmp.eq.s32.totalorder %v152, %v1386
    %vm1391 = vcmp.eq.s32.totalorder %v153, %v1382
    %vm1392 = vcmp.eq.s32.totalorder %v153, %v1386
    %vm1393 = vcmp.eq.s32.totalorder %v154, %v1382
    %vm1394 = vcmp.eq.s32.totalorder %v154, %v1386
    %vm1395 = vcmp.eq.s32.totalorder %v155, %v1382
    %vm1396 = vcmp.eq.s32.totalorder %v155, %v1386
    %vm1397 = vcmp.eq.s32.totalorder %v156, %v1382
    %vm1398 = vcmp.eq.s32.totalorder %v156, %v1386
    %vm1399 = vcmp.eq.s32.totalorder %v157, %v1382
    %vm1400 = vcmp.eq.s32.totalorder %v157, %v1386
    %vm1401 = vcmp.eq.s32.totalorder %v158, %v1382
    %vm1402 = vcmp.eq.s32.totalorder %v158, %v1386
    %v1403 = vsub.f32 1.0, %v1151
    %v1404 = vsub.f32 1.0, %v1152
    %v1405 = vlaneseq
    %v1406 = vshrl.u32 %v1405, 7
    %v1407 = vsub.s32 0, %v1406
    %v1408 = vrot.slane %v1403, %v1407
    %v1409 = vlaneseq
    %v1410 = vshrl.u32 %v1409, 7
    %v1411 = vsub.s32 0, %v1410
    %v1412 = vrot.slane %v1404, %v1411
    %v1413 = vsel %vm1387, %v1408, 0.0
    %v1414 = vsel %vm1388, %v1412, 0.0
    %v1415 = vsel %vm1389, %v1408, 0.0
    %v1416 = vsel %vm1390, %v1412, 0.0
    %v1417 = vsel %vm1391, %v1408, 0.0
    %v1418 = vsel %vm1392, %v1412, 0.0
    %v1419 = vsel %vm1393, %v1408, 0.0
    %v1420 = vsel %vm1394, %v1412, 0.0
    %v1421 = vsel %vm1395, %v1408, 0.0
    %v1422 = vsel %vm1396, %v1412, 0.0
    %v1423 = vsel %vm1397, %v1408, 0.0
    %v1424 = vsel %vm1398, %v1412, 0.0
    %v1425 = vsel %vm1399, %v1408, 0.0
    %v1426 = vsel %vm1400, %v1412, 0.0
    %v1427 = vsel %vm1401, %v1408, 0.0
    %v1428 = vsel %vm1402, %v1412, 0.0
    %v1429 = vadd.s32 %v1153, 1
    %v1430 = vadd.s32 %v1154, 1
    %v1431 = vlaneseq
    %v1432 = vshrl.u32 %v1431, 7
    %v1433 = vsub.s32 0, %v1432
    %v1434 = vrot.slane %v1429, %v1433
    %v1435 = vlaneseq
    %v1436 = vshrl.u32 %v1435, 7
    %v1437 = vsub.s32 0, %v1436
    %v1438 = vrot.slane %v1430, %v1437
    %vm1439 = vcmp.eq.s32.totalorder %v151, %v1434
    %vm1440 = vcmp.eq.s32.totalorder %v151, %v1438
    %vm1441 = vcmp.eq.s32.totalorder %v152, %v1434
    %vm1442 = vcmp.eq.s32.totalorder %v152, %v1438
    %vm1443 = vcmp.eq.s32.totalorder %v153, %v1434
    %vm1444 = vcmp.eq.s32.totalorder %v153, %v1438
    %vm1445 = vcmp.eq.s32.totalorder %v154, %v1434
    %vm1446 = vcmp.eq.s32.totalorder %v154, %v1438
    %vm1447 = vcmp.eq.s32.totalorder %v155, %v1434
    %vm1448 = vcmp.eq.s32.totalorder %v155, %v1438
    %vm1449 = vcmp.eq.s32.totalorder %v156, %v1434
    %vm1450 = vcmp.eq.s32.totalorder %v156, %v1438
    %vm1451 = vcmp.eq.s32.totalorder %v157, %v1434
    %vm1452 = vcmp.eq.s32.totalorder %v157, %v1438
    %vm1453 = vcmp.eq.s32.totalorder %v158, %v1434
    %vm1454 = vcmp.eq.s32.totalorder %v158, %v1438
    %v1455 = vlaneseq
    %v1456 = vshrl.u32 %v1455, 7
    %v1457 = vsub.s32 0, %v1456
    %v1458 = vrot.slane %v1151, %v1457
    %v1459 = vlaneseq
    %v1460 = vshrl.u32 %v1459, 7
    %v1461 = vsub.s32 0, %v1460
    %v1462 = vrot.slane %v1152, %v1461
    %v1463 = vsel %vm1439, %v1458, 0.0
    %v1464 = vsel %vm1440, %v1462, 0.0
    %v1465 = vsel %vm1441, %v1458, 0.0
    %v1466 = vsel %vm1442, %v1462, 0.0
    %v1467 = vsel %vm1443, %v1458, 0.0
    %v1468 = vsel %vm1444, %v1462, 0.0
    %v1469 = vsel %vm1445, %v1458, 0.0
    %v1470 = vsel %vm1446, %v1462, 0.0
    %v1471 = vsel %vm1447, %v1458, 0.0
    %v1472 = vsel %vm1448, %v1462, 0.0
    %v1473 = vsel %vm1449, %v1458, 0.0
    %v1474 = vsel %vm1450, %v1462, 0.0
    %v1475 = vsel %vm1451, %v1458, 0.0
    %v1476 = vsel %vm1452, %v1462, 0.0
    %v1477 = vsel %vm1453, %v1458, 0.0
    %v1478 = vsel %vm1454, %v1462, 0.0
    %v1479 = vadd.f32 %v1413, %v1463
    %v1480 = vadd.f32 %v1414, %v1464
    %v1481 = vadd.f32 %v1415, %v1465
    %v1482 = vadd.f32 %v1416, %v1466
    %v1483 = vadd.f32 %v1417, %v1467
    %v1484 = vadd.f32 %v1418, %v1468
    %v1485 = vadd.f32 %v1419, %v1469
    %v1486 = vadd.f32 %v1420, %v1470
    %v1487 = vadd.f32 %v1421, %v1471
    %v1488 = vadd.f32 %v1422, %v1472
    %v1489 = vadd.f32 %v1423, %v1473
    %v1490 = vadd.f32 %v1424, %v1474
    %v1491 = vadd.f32 %v1425, %v1475
    %v1492 = vadd.f32 %v1426, %v1476
    %v1493 = vadd.f32 %v1427, %v1477
    %v1494 = vadd.f32 %v1428, %v1478
    %v1495 = vmul.f32 %v1479, %v1363
    %v1496 = vmul.f32 %v1480, %v1364
    %v1497 = vmul.f32 %v1481, %v1365
    %v1498 = vmul.f32 %v1482, %v1366
    %v1499 = vmul.f32 %v1483, %v1367
    %v1500 = vmul.f32 %v1484, %v1368
    %v1501 = vmul.f32 %v1485, %v1369
    %v1502 = vmul.f32 %v1486, %v1370
    %v1503 = vmul.f32 %v1487, %v1371
    %v1504 = vmul.f32 %v1488, %v1372
    %v1505 = vmul.f32 %v1489, %v1373
    %v1506 = vmul.f32 %v1490, %v1374
    %v1507 = vmul.f32 %v1491, %v1375
    %v1508 = vmul.f32 %v1492, %v1376
    %v1509 = vmul.f32 %v1493, %v1377
    %v1510 = vmul.f32 %v1494, %v1378
    %v1511 = vmul.f32 %v1495, %v1251
    %v1512 = vmul.f32 %v1496, %v1252
    %v1513 = vmul.f32 %v1497, %v1253
    %v1514 = vmul.f32 %v1498, %v1254
    %v1515 = vmul.f32 %v1499, %v1255
    %v1516 = vmul.f32 %v1500, %v1256
    %v1517 = vmul.f32 %v1501, %v1257
    %v1518 = vmul.f32 %v1502, %v1258
    %v1519 = vmul.f32 %v1503, %v1259
    %v1520 = vmul.f32 %v1504, %v1260
    %v1521 = vmul.f32 %v1505, %v1261
    %v1522 = vmul.f32 %v1506, %v1262
    %v1523 = vmul.f32 %v1507, %v1263
    %v1524 = vmul.f32 %v1508, %v1264
    %v1525 = vmul.f32 %v1509, %v1265
    %v1526 = vmul.f32 %v1510, %v1266
    %s1527 = scalar_lea.vmem %s3, 64
    %v1528 = vld [vmem:[%s1527] sm:$0xff]
    %v1529 = vld [vmem:[%s1527 + $0x8] sm:$0xff]
    %v1530 = vld [vmem:[%s1527 + $0x10] sm:$0xff]
    %v1531 = vld [vmem:[%s1527 + $0x18] sm:$0xff]
    %v1533 = vsel %vm942, %v1528, 0
    %v1536 = vsel %vm942, %v1529, 0
    %v1539 = vsel %vm942, %v1530, 0
    %v1542 = vsel %vm942, %v1531, 0
    %1544 = vmatprep.subr.mxu0 %v1512
    %1545 = vmatpush1.msra.mxu0 %v1511
    %1546 = vmatprep.subr.mxu0 %v1514
    %1547 = vmatpush1.msra.mxu0 %v1513
    %1548 = vmatprep.subr.mxu0 %v1516
    %1549 = vmatpush1.msra.mxu0 %v1515
    %1550 = vmatprep.subr.mxu0 %v1518
    %1551 = vmatpush1.msra.mxu0 %v1517
    %1552 = vmatprep.subr.mxu0 %v1520
    %1553 = vmatpush1.msra.mxu0 %v1519
    %1554 = vmatprep.subr.mxu0 %v1522
    %1555 = vmatpush1.msra.mxu0 %v1521
    %1556 = vmatprep.subr.mxu0 %v1524
    %1557 = vmatpush1.msra.mxu0 %v1523
    %1558 = vmatprep.subr.mxu0 %v1526
    %1559 = vmatpush1.msra.mxu0 %v1525
    %1560 = vmatprep.subr.mxu0 0.0
    %1561 = vmatpush1.msra.mxu0 0.0
    %1562 = vmatprep.subr.mxu0 0.0
    %1563 = vmatpush1.msra.mxu0 0.0
    %1564 = vmatprep.subr.mxu0 0.0
    %1565 = vmatpush1.msra.mxu0 0.0
    %1566 = vmatprep.subr.mxu0 0.0
    %1567 = vmatpush1.msra.mxu0 0.0
    %1568 = vmatprep.subr.mxu0 0.0
    %1569 = vmatpush1.msra.mxu0 0.0
    %1570 = vmatprep.subr.mxu0 0.0
    %1571 = vmatpush1.msra.mxu0 0.0
    %1572 = vmatprep.subr.mxu0 0.0
    %1573 = vmatpush1.msra.mxu0 0.0
    %1574 = vmatprep.subr.mxu0 0.0
    %1575 = vmatpush1.msra.mxu0 0.0
    %1576 = vmatprep.subr.mxu0 0.0
    %1577 = vmatpush1.msra.mxu0 0.0
    %1578 = vmatprep.subr.mxu0 0.0
    %1579 = vmatpush1.msra.mxu0 0.0
    %1580 = vmatprep.subr.mxu0 0.0
    %1581 = vmatpush1.msra.mxu0 0.0
    %1582 = vmatprep.subr.mxu0 0.0
    %1583 = vmatpush1.msra.mxu0 0.0
    %1584 = vmatprep.subr.mxu0 0.0
    %1585 = vmatpush1.msra.mxu0 0.0
    %1586 = vmatprep.subr.mxu0 0.0
    %1587 = vmatpush1.msra.mxu0 0.0
    %1588 = vmatprep.subr.mxu0 0.0
    %1589 = vmatpush1.msra.mxu0 0.0
    %1590 = vmatprep.subr.mxu0 0.0
    %1591 = vmatpush1.msra.mxu0 0.0
    %1592 = vmatprep.subr.mxu0 0.0
    %1593 = vmatpush1.msra.mxu0 0.0
    %1594 = vmatprep.subr.mxu0 0.0
    %1595 = vmatpush1.msra.mxu0 0.0
    %1596 = vmatprep.subr.mxu0 0.0
    %1597 = vmatpush1.msra.mxu0 0.0
    %1598 = vmatprep.subr.mxu0 0.0
    %1599 = vmatpush1.msra.mxu0 0.0
    %1600 = vmatprep.subr.mxu0 0.0
    %1601 = vmatpush1.msra.mxu0 0.0
    %1602 = vmatprep.subr.mxu0 0.0
    %1603 = vmatpush1.msra.mxu0 0.0
    %1604 = vmatprep.subr.mxu0 0.0
    %1605 = vmatpush1.msra.mxu0 0.0
    %1606 = vmatprep.subr.mxu0 0.0
    %1607 = vmatpush1.msra.mxu0 0.0
    %1608 = vmatprep.mubr.f32.mxu0 0.0
    %1609 = vmatmul.mubr.f32.gmra.mrb[0].mxu0 %v1533
    %v1610 = vpop.f32.mrb[0].mxu0
    %v1611 = vadd.f32 0.0, %v1610
    %v1612 = vpop.f32.mrb[0].mxu0
    %v1613 = vadd.f32 0.0, %v1612
    %1614 = vmatprep.mubr.f32.mxu0 0.0
    %1615 = vmatmul.mubr.f32.gmra.mrb[0].mxu0 %v1536
    %v1616 = vpop.f32.mrb[0].mxu0
    %v1617 = vadd.f32 0.0, %v1616
    %v1618 = vpop.f32.mrb[0].mxu0
    %v1619 = vadd.f32 0.0, %v1618
    %1620 = vmatprep.mubr.f32.mxu0 0.0
    %1621 = vmatmul.mubr.f32.gmra.mrb[0].mxu0 %v1539
    %v1622 = vpop.f32.mrb[0].mxu0
    %v1623 = vadd.f32 0.0, %v1622
    %v1624 = vpop.f32.mrb[0].mxu0
    %v1625 = vadd.f32 0.0, %v1624
    %1626 = vmatprep.mubr.f32.mxu0 0.0
    %1627 = vmatmul.mubr.f32.gmra.mrb[0].mxu0 %v1542
    %v1628 = vpop.f32.mrb[0].mxu0
    %v1629 = vadd.f32 0.0, %v1628
    %v1630 = vpop.f32.mrb[0].mxu0
    %v1631 = vadd.f32 0.0, %v1630
    %1632 = vdwg.mxu0
    %v1633 = vadd.f32 %v1123, %v1611
    %v1634 = vadd.f32 %v1125, %v1613
    %v1635 = vadd.f32 %v1129, %v1617
    %v1636 = vadd.f32 %v1131, %v1619
    %v1637 = vadd.f32 %v1135, %v1623
    %v1638 = vadd.f32 %v1137, %v1625
    %v1639 = vadd.f32 %v1141, %v1629
    %v1640 = vadd.f32 %v1143, %v1631
    %v1641 = vlaneseq
    %v1642 = vshrl.u32 %v1641, 7
    %v1643 = vsub.s32 1, %v1642
    %v1644 = vrot.slane %v1153, %v1643
    %v1645 = vlaneseq
    %v1646 = vshrl.u32 %v1645, 7
    %v1647 = vsub.s32 1, %v1646
    %v1648 = vrot.slane %v1154, %v1647
    %vm1649 = vcmp.eq.s32.totalorder %v175, %v1644
    %vm1650 = vcmp.eq.s32.totalorder %v175, %v1648
    %vm1651 = vcmp.eq.s32.totalorder %v176, %v1644
    %vm1652 = vcmp.eq.s32.totalorder %v176, %v1648
    %vm1653 = vcmp.eq.s32.totalorder %v177, %v1644
    %vm1654 = vcmp.eq.s32.totalorder %v177, %v1648
    %vm1655 = vcmp.eq.s32.totalorder %v178, %v1644
    %vm1656 = vcmp.eq.s32.totalorder %v178, %v1648
    %vm1657 = vcmp.eq.s32.totalorder %v179, %v1644
    %vm1658 = vcmp.eq.s32.totalorder %v179, %v1648
    %vm1659 = vcmp.eq.s32.totalorder %v180, %v1644
    %vm1660 = vcmp.eq.s32.totalorder %v180, %v1648
    %vm1661 = vcmp.eq.s32.totalorder %v181, %v1644
    %vm1662 = vcmp.eq.s32.totalorder %v181, %v1648
    %vm1663 = vcmp.eq.s32.totalorder %v182, %v1644
    %vm1664 = vcmp.eq.s32.totalorder %v182, %v1648
    %v1665 = vlaneseq
    %v1666 = vshrl.u32 %v1665, 7
    %v1667 = vsub.s32 1, %v1666
    %v1668 = vrot.slane %v1403, %v1667
    %v1669 = vlaneseq
    %v1670 = vshrl.u32 %v1669, 7
    %v1671 = vsub.s32 1, %v1670
    %v1672 = vrot.slane %v1404, %v1671
    %v1673 = vsel %vm1649, %v1668, 0.0
    %v1674 = vsel %vm1650, %v1672, 0.0
    %v1675 = vsel %vm1651, %v1668, 0.0
    %v1676 = vsel %vm1652, %v1672, 0.0
    %v1677 = vsel %vm1653, %v1668, 0.0
    %v1678 = vsel %vm1654, %v1672, 0.0
    %v1679 = vsel %vm1655, %v1668, 0.0
    %v1680 = vsel %vm1656, %v1672, 0.0
    %v1681 = vsel %vm1657, %v1668, 0.0
    %v1682 = vsel %vm1658, %v1672, 0.0
    %v1683 = vsel %vm1659, %v1668, 0.0
    %v1684 = vsel %vm1660, %v1672, 0.0
    %v1685 = vsel %vm1661, %v1668, 0.0
    %v1686 = vsel %vm1662, %v1672, 0.0
    %v1687 = vsel %vm1663, %v1668, 0.0
    %v1688 = vsel %vm1664, %v1672, 0.0
    %v1689 = vlaneseq
    %v1690 = vshrl.u32 %v1689, 7
    %v1691 = vsub.s32 1, %v1690
    %v1692 = vrot.slane %v1429, %v1691
    %v1693 = vlaneseq
    %v1694 = vshrl.u32 %v1693, 7
    %v1695 = vsub.s32 1, %v1694
    %v1696 = vrot.slane %v1430, %v1695
    %vm1697 = vcmp.eq.s32.totalorder %v175, %v1692
    %vm1698 = vcmp.eq.s32.totalorder %v175, %v1696
    %vm1699 = vcmp.eq.s32.totalorder %v176, %v1692
    %vm1700 = vcmp.eq.s32.totalorder %v176, %v1696
    %vm1701 = vcmp.eq.s32.totalorder %v177, %v1692
    %vm1702 = vcmp.eq.s32.totalorder %v177, %v1696
    %vm1703 = vcmp.eq.s32.totalorder %v178, %v1692
    %vm1704 = vcmp.eq.s32.totalorder %v178, %v1696
    %vm1705 = vcmp.eq.s32.totalorder %v179, %v1692
    %vm1706 = vcmp.eq.s32.totalorder %v179, %v1696
    %vm1707 = vcmp.eq.s32.totalorder %v180, %v1692
    %vm1708 = vcmp.eq.s32.totalorder %v180, %v1696
    %vm1709 = vcmp.eq.s32.totalorder %v181, %v1692
    %vm1710 = vcmp.eq.s32.totalorder %v181, %v1696
    %vm1711 = vcmp.eq.s32.totalorder %v182, %v1692
    %vm1712 = vcmp.eq.s32.totalorder %v182, %v1696
    %v1713 = vlaneseq
    %v1714 = vshrl.u32 %v1713, 7
    %v1715 = vsub.s32 1, %v1714
    %v1716 = vrot.slane %v1151, %v1715
    %v1717 = vlaneseq
    %v1718 = vshrl.u32 %v1717, 7
    %v1719 = vsub.s32 1, %v1718
    %v1720 = vrot.slane %v1152, %v1719
    %v1721 = vsel %vm1697, %v1716, 0.0
    %v1722 = vsel %vm1698, %v1720, 0.0
    %v1723 = vsel %vm1699, %v1716, 0.0
    %v1724 = vsel %vm1700, %v1720, 0.0
    %v1725 = vsel %vm1701, %v1716, 0.0
    %v1726 = vsel %vm1702, %v1720, 0.0
    %v1727 = vsel %vm1703, %v1716, 0.0
    %v1728 = vsel %vm1704, %v1720, 0.0
    %v1729 = vsel %vm1705, %v1716, 0.0
    %v1730 = vsel %vm1706, %v1720, 0.0
    %v1731 = vsel %vm1707, %v1716, 0.0
    %v1732 = vsel %vm1708, %v1720, 0.0
    %v1733 = vsel %vm1709, %v1716, 0.0
    %v1734 = vsel %vm1710, %v1720, 0.0
    %v1735 = vsel %vm1711, %v1716, 0.0
    %v1736 = vsel %vm1712, %v1720, 0.0
    %v1737 = vadd.f32 %v1673, %v1721
    %v1738 = vadd.f32 %v1674, %v1722
    %v1739 = vadd.f32 %v1675, %v1723
    %v1740 = vadd.f32 %v1676, %v1724
    %v1741 = vadd.f32 %v1677, %v1725
    %v1742 = vadd.f32 %v1678, %v1726
    %v1743 = vadd.f32 %v1679, %v1727
    %v1744 = vadd.f32 %v1680, %v1728
    %v1745 = vadd.f32 %v1681, %v1729
    %v1746 = vadd.f32 %v1682, %v1730
    %v1747 = vadd.f32 %v1683, %v1731
    %v1748 = vadd.f32 %v1684, %v1732
    %v1749 = vadd.f32 %v1685, %v1733
    %v1750 = vadd.f32 %v1686, %v1734
    %v1751 = vadd.f32 %v1687, %v1735
    %v1752 = vadd.f32 %v1688, %v1736
    %v1753 = vlaneseq
    %v1754 = vshrl.u32 %v1753, 7
    %v1755 = vsub.s32 2, %v1754
    %v1756 = vrot.slane %v1153, %v1755
    %v1757 = vlaneseq
    %v1758 = vshrl.u32 %v1757, 7
    %v1759 = vsub.s32 2, %v1758
    %v1760 = vrot.slane %v1154, %v1759
    %vm1761 = vcmp.eq.s32.totalorder %v167, %v1756
    %vm1762 = vcmp.eq.s32.totalorder %v167, %v1760
    %vm1763 = vcmp.eq.s32.totalorder %v168, %v1756
    %vm1764 = vcmp.eq.s32.totalorder %v168, %v1760
    %vm1765 = vcmp.eq.s32.totalorder %v169, %v1756
    %vm1766 = vcmp.eq.s32.totalorder %v169, %v1760
    %vm1767 = vcmp.eq.s32.totalorder %v170, %v1756
    %vm1768 = vcmp.eq.s32.totalorder %v170, %v1760
    %vm1769 = vcmp.eq.s32.totalorder %v171, %v1756
    %vm1770 = vcmp.eq.s32.totalorder %v171, %v1760
    %vm1771 = vcmp.eq.s32.totalorder %v172, %v1756
    %vm1772 = vcmp.eq.s32.totalorder %v172, %v1760
    %vm1773 = vcmp.eq.s32.totalorder %v173, %v1756
    %vm1774 = vcmp.eq.s32.totalorder %v173, %v1760
    %vm1775 = vcmp.eq.s32.totalorder %v174, %v1756
    %vm1776 = vcmp.eq.s32.totalorder %v174, %v1760
    %v1777 = vlaneseq
    %v1778 = vshrl.u32 %v1777, 7
    %v1779 = vsub.s32 2, %v1778
    %v1780 = vrot.slane %v1403, %v1779
    %v1781 = vlaneseq
    %v1782 = vshrl.u32 %v1781, 7
    %v1783 = vsub.s32 2, %v1782
    %v1784 = vrot.slane %v1404, %v1783
    %v1785 = vsel %vm1761, %v1780, 0.0
    %v1786 = vsel %vm1762, %v1784, 0.0
    %v1787 = vsel %vm1763, %v1780, 0.0
    %v1788 = vsel %vm1764, %v1784, 0.0
    %v1789 = vsel %vm1765, %v1780, 0.0
    %v1790 = vsel %vm1766, %v1784, 0.0
    %v1791 = vsel %vm1767, %v1780, 0.0
    %v1792 = vsel %vm1768, %v1784, 0.0
    %v1793 = vsel %vm1769, %v1780, 0.0
    %v1794 = vsel %vm1770, %v1784, 0.0
    %v1795 = vsel %vm1771, %v1780, 0.0
    %v1796 = vsel %vm1772, %v1784, 0.0
    %v1797 = vsel %vm1773, %v1780, 0.0
    %v1798 = vsel %vm1774, %v1784, 0.0
    %v1799 = vsel %vm1775, %v1780, 0.0
    %v1800 = vsel %vm1776, %v1784, 0.0
    %v1801 = vlaneseq
    %v1802 = vshrl.u32 %v1801, 7
    %v1803 = vsub.s32 2, %v1802
    %v1804 = vrot.slane %v1429, %v1803
    %v1805 = vlaneseq
    %v1806 = vshrl.u32 %v1805, 7
    %v1807 = vsub.s32 2, %v1806
    %v1808 = vrot.slane %v1430, %v1807
    %vm1809 = vcmp.eq.s32.totalorder %v167, %v1804
    %vm1810 = vcmp.eq.s32.totalorder %v167, %v1808
    %vm1811 = vcmp.eq.s32.totalorder %v168, %v1804
    %vm1812 = vcmp.eq.s32.totalorder %v168, %v1808
    %vm1813 = vcmp.eq.s32.totalorder %v169, %v1804
    %vm1814 = vcmp.eq.s32.totalorder %v169, %v1808
    %vm1815 = vcmp.eq.s32.totalorder %v170, %v1804
    %vm1816 = vcmp.eq.s32.totalorder %v170, %v1808
    %vm1817 = vcmp.eq.s32.totalorder %v171, %v1804
    %vm1818 = vcmp.eq.s32.totalorder %v171, %v1808
    %vm1819 = vcmp.eq.s32.totalorder %v172, %v1804
    %vm1820 = vcmp.eq.s32.totalorder %v172, %v1808
    %vm1821 = vcmp.eq.s32.totalorder %v173, %v1804
    %vm1822 = vcmp.eq.s32.totalorder %v173, %v1808
    %vm1823 = vcmp.eq.s32.totalorder %v174, %v1804
    %vm1824 = vcmp.eq.s32.totalorder %v174, %v1808
    %v1825 = vlaneseq
    %v1826 = vshrl.u32 %v1825, 7
    %v1827 = vsub.s32 2, %v1826
    %v1828 = vrot.slane %v1151, %v1827
    %v1829 = vlaneseq
    %v1830 = vshrl.u32 %v1829, 7
    %v1831 = vsub.s32 2, %v1830
    %v1832 = vrot.slane %v1152, %v1831
    %v1833 = vsel %vm1809, %v1828, 0.0
    %v1834 = vsel %vm1810, %v1832, 0.0
    %v1835 = vsel %vm1811, %v1828, 0.0
    %v1836 = vsel %vm1812, %v1832, 0.0
    %v1837 = vsel %vm1813, %v1828, 0.0
    %v1838 = vsel %vm1814, %v1832, 0.0
    %v1839 = vsel %vm1815, %v1828, 0.0
    %v1840 = vsel %vm1816, %v1832, 0.0
    %v1841 = vsel %vm1817, %v1828, 0.0
    %v1842 = vsel %vm1818, %v1832, 0.0
    %v1843 = vsel %vm1819, %v1828, 0.0
    %v1844 = vsel %vm1820, %v1832, 0.0
    %v1845 = vsel %vm1821, %v1828, 0.0
    %v1846 = vsel %vm1822, %v1832, 0.0
    %v1847 = vsel %vm1823, %v1828, 0.0
    %v1848 = vsel %vm1824, %v1832, 0.0
    %v1849 = vadd.f32 %v1785, %v1833
    %v1850 = vadd.f32 %v1786, %v1834
    %v1851 = vadd.f32 %v1787, %v1835
    %v1852 = vadd.f32 %v1788, %v1836
    %v1853 = vadd.f32 %v1789, %v1837
    %v1854 = vadd.f32 %v1790, %v1838
    %v1855 = vadd.f32 %v1791, %v1839
    %v1856 = vadd.f32 %v1792, %v1840
    %v1857 = vadd.f32 %v1793, %v1841
    %v1858 = vadd.f32 %v1794, %v1842
    %v1859 = vadd.f32 %v1795, %v1843
    %v1860 = vadd.f32 %v1796, %v1844
    %v1861 = vadd.f32 %v1797, %v1845
    %v1862 = vadd.f32 %v1798, %v1846
    %v1863 = vadd.f32 %v1799, %v1847
    %v1864 = vadd.f32 %v1800, %v1848
    %v1865 = vlaneseq
    %v1866 = vshrl.u32 %v1865, 7
    %v1867 = vsub.s32 3, %v1866
    %v1868 = vrot.slane %v1153, %v1867
    %v1869 = vlaneseq
    %v1870 = vshrl.u32 %v1869, 7
    %v1871 = vsub.s32 3, %v1870
    %v1872 = vrot.slane %v1154, %v1871
    %vm1873 = vcmp.eq.s32.totalorder %v151, %v1868
    %vm1874 = vcmp.eq.s32.totalorder %v151, %v1872
    %vm1875 = vcmp.eq.s32.totalorder %v152, %v1868
    %vm1876 = vcmp.eq.s32.totalorder %v152, %v1872
    %vm1877 = vcmp.eq.s32.totalorder %v153, %v1868
    %vm1878 = vcmp.eq.s32.totalorder %v153, %v1872
    %vm1879 = vcmp.eq.s32.totalorder %v154, %v1868
    %vm1880 = vcmp.eq.s32.totalorder %v154, %v1872
    %vm1881 = vcmp.eq.s32.totalorder %v155, %v1868
    %vm1882 = vcmp.eq.s32.totalorder %v155, %v1872
    %vm1883 = vcmp.eq.s32.totalorder %v156, %v1868
    %vm1884 = vcmp.eq.s32.totalorder %v156, %v1872
    %vm1885 = vcmp.eq.s32.totalorder %v157, %v1868
    %vm1886 = vcmp.eq.s32.totalorder %v157, %v1872
    %vm1887 = vcmp.eq.s32.totalorder %v158, %v1868
    %vm1888 = vcmp.eq.s32.totalorder %v158, %v1872
    %v1889 = vlaneseq
    %v1890 = vshrl.u32 %v1889, 7
    %v1891 = vsub.s32 3, %v1890
    %v1892 = vrot.slane %v1403, %v1891
    %v1893 = vlaneseq
    %v1894 = vshrl.u32 %v1893, 7
    %v1895 = vsub.s32 3, %v1894
    %v1896 = vrot.slane %v1404, %v1895
    %v1897 = vsel %vm1873, %v1892, 0.0
    %v1898 = vsel %vm1874, %v1896, 0.0
    %v1899 = vsel %vm1875, %v1892, 0.0
    %v1900 = vsel %vm1876, %v1896, 0.0
    %v1901 = vsel %vm1877, %v1892, 0.0
    %v1902 = vsel %vm1878, %v1896, 0.0
    %v1903 = vsel %vm1879, %v1892, 0.0
    %v1904 = vsel %vm1880, %v1896, 0.0
    %v1905 = vsel %vm1881, %v1892, 0.0
    %v1906 = vsel %vm1882, %v1896, 0.0
    %v1907 = vsel %vm1883, %v1892, 0.0
    %v1908 = vsel %vm1884, %v1896, 0.0
    %v1909 = vsel %vm1885, %v1892, 0.0
    %v1910 = vsel %vm1886, %v1896, 0.0
    %v1911 = vsel %vm1887, %v1892, 0.0
    %v1912 = vsel %vm1888, %v1896, 0.0
    %v1913 = vlaneseq
    %v1914 = vshrl.u32 %v1913, 7
    %v1915 = vsub.s32 3, %v1914
    %v1916 = vrot.slane %v1429, %v1915
    %v1917 = vlaneseq
    %v1918 = vshrl.u32 %v1917, 7
    %v1919 = vsub.s32 3, %v1918
    %v1920 = vrot.slane %v1430, %v1919
    %vm1921 = vcmp.eq.s32.totalorder %v151, %v1916
    %vm1922 = vcmp.eq.s32.totalorder %v151, %v1920
    %vm1923 = vcmp.eq.s32.totalorder %v152, %v1916
    %vm1924 = vcmp.eq.s32.totalorder %v152, %v1920
    %vm1925 = vcmp.eq.s32.totalorder %v153, %v1916
    %vm1926 = vcmp.eq.s32.totalorder %v153, %v1920
    %vm1927 = vcmp.eq.s32.totalorder %v154, %v1916
    %vm1928 = vcmp.eq.s32.totalorder %v154, %v1920
    %vm1929 = vcmp.eq.s32.totalorder %v155, %v1916
    %vm1930 = vcmp.eq.s32.totalorder %v155, %v1920
    %vm1931 = vcmp.eq.s32.totalorder %v156, %v1916
    %vm1932 = vcmp.eq.s32.totalorder %v156, %v1920
    %vm1933 = vcmp.eq.s32.totalorder %v157, %v1916
    %vm1934 = vcmp.eq.s32.totalorder %v157, %v1920
    %vm1935 = vcmp.eq.s32.totalorder %v158, %v1916
    %vm1936 = vcmp.eq.s32.totalorder %v158, %v1920
    %v1937 = vlaneseq
    %v1938 = vshrl.u32 %v1937, 7
    %v1939 = vsub.s32 3, %v1938
    %v1940 = vrot.slane %v1151, %v1939
    %v1941 = vlaneseq
    %v1942 = vshrl.u32 %v1941, 7
    %v1943 = vsub.s32 3, %v1942
    %v1944 = vrot.slane %v1152, %v1943
    %v1945 = vsel %vm1921, %v1940, 0.0
    %v1946 = vsel %vm1922, %v1944, 0.0
    %v1947 = vsel %vm1923, %v1940, 0.0
    %v1948 = vsel %vm1924, %v1944, 0.0
    %v1949 = vsel %vm1925, %v1940, 0.0
    %v1950 = vsel %vm1926, %v1944, 0.0
    %v1951 = vsel %vm1927, %v1940, 0.0
    %v1952 = vsel %vm1928, %v1944, 0.0
    %v1953 = vsel %vm1929, %v1940, 0.0
    %v1954 = vsel %vm1930, %v1944, 0.0
    %v1955 = vsel %vm1931, %v1940, 0.0
    %v1956 = vsel %vm1932, %v1944, 0.0
    %v1957 = vsel %vm1933, %v1940, 0.0
    %v1958 = vsel %vm1934, %v1944, 0.0
    %v1959 = vsel %vm1935, %v1940, 0.0
    %v1960 = vsel %vm1936, %v1944, 0.0
    %v1961 = vadd.f32 %v1897, %v1945
    %v1962 = vadd.f32 %v1898, %v1946
    %v1963 = vadd.f32 %v1899, %v1947
    %v1964 = vadd.f32 %v1900, %v1948
    %v1965 = vadd.f32 %v1901, %v1949
    %v1966 = vadd.f32 %v1902, %v1950
    %v1967 = vadd.f32 %v1903, %v1951
    %v1968 = vadd.f32 %v1904, %v1952
    %v1969 = vadd.f32 %v1905, %v1953
    %v1970 = vadd.f32 %v1906, %v1954
    %v1971 = vadd.f32 %v1907, %v1955
    %v1972 = vadd.f32 %v1908, %v1956
    %v1973 = vadd.f32 %v1909, %v1957
    %v1974 = vadd.f32 %v1910, %v1958
    %v1975 = vadd.f32 %v1911, %v1959
    %v1976 = vadd.f32 %v1912, %v1960
    %v1977 = vmul.f32 %v1961, %v1849
    %v1978 = vmul.f32 %v1962, %v1850
    %v1979 = vmul.f32 %v1963, %v1851
    %v1980 = vmul.f32 %v1964, %v1852
    %v1981 = vmul.f32 %v1965, %v1853
    %v1982 = vmul.f32 %v1966, %v1854
    %v1983 = vmul.f32 %v1967, %v1855
    %v1984 = vmul.f32 %v1968, %v1856
    %v1985 = vmul.f32 %v1969, %v1857
    %v1986 = vmul.f32 %v1970, %v1858
    %v1987 = vmul.f32 %v1971, %v1859
    %v1988 = vmul.f32 %v1972, %v1860
    %v1989 = vmul.f32 %v1973, %v1861
    %v1990 = vmul.f32 %v1974, %v1862
    %v1991 = vmul.f32 %v1975, %v1863
    %v1992 = vmul.f32 %v1976, %v1864
    %v1993 = vmul.f32 %v1977, %v1737
    %v1994 = vmul.f32 %v1978, %v1738
    %v1995 = vmul.f32 %v1979, %v1739
    %v1996 = vmul.f32 %v1980, %v1740
    %v1997 = vmul.f32 %v1981, %v1741
    %v1998 = vmul.f32 %v1982, %v1742
    %v1999 = vmul.f32 %v1983, %v1743
    %v2000 = vmul.f32 %v1984, %v1744
    %v2001 = vmul.f32 %v1985, %v1745
    %v2002 = vmul.f32 %v1986, %v1746
    %v2003 = vmul.f32 %v1987, %v1747
    %v2004 = vmul.f32 %v1988, %v1748
    %v2005 = vmul.f32 %v1989, %v1749
    %v2006 = vmul.f32 %v1990, %v1750
    %v2007 = vmul.f32 %v1991, %v1751
    %v2008 = vmul.f32 %v1992, %v1752
    %s2009 = scalar_lea.vmem %s3, 96
    %v2010 = vld [vmem:[%s2009] sm:$0xff]
    %v2011 = vld [vmem:[%s2009 + $0x8] sm:$0xff]
    %v2012 = vld [vmem:[%s2009 + $0x10] sm:$0xff]
    %v2013 = vld [vmem:[%s2009 + $0x18] sm:$0xff]
    %v2015 = vsel %vm942, %v2010, 0
    %v2018 = vsel %vm942, %v2011, 0
    %v2021 = vsel %vm942, %v2012, 0
    %v2024 = vsel %vm942, %v2013, 0
    %2026 = vmatprep.subr.mxu0 %v1994
    %2027 = vmatpush1.msra.mxu0 %v1993
    %2028 = vmatprep.subr.mxu0 %v1996
    %2029 = vmatpush1.msra.mxu0 %v1995
    %2030 = vmatprep.subr.mxu0 %v1998
    %2031 = vmatpush1.msra.mxu0 %v1997
    %2032 = vmatprep.subr.mxu0 %v2000
    %2033 = vmatpush1.msra.mxu0 %v1999
    %2034 = vmatprep.subr.mxu0 %v2002
    %2035 = vmatpush1.msra.mxu0 %v2001
    %2036 = vmatprep.subr.mxu0 %v2004
    %2037 = vmatpush1.msra.mxu0 %v2003
    %2038 = vmatprep.subr.mxu0 %v2006
    %2039 = vmatpush1.msra.mxu0 %v2005
    %2040 = vmatprep.subr.mxu0 %v2008
    %2041 = vmatpush1.msra.mxu0 %v2007
    %2042 = vmatprep.subr.mxu0 0.0
    %2043 = vmatpush1.msra.mxu0 0.0
    %2044 = vmatprep.subr.mxu0 0.0
    %2045 = vmatpush1.msra.mxu0 0.0
    %2046 = vmatprep.subr.mxu0 0.0
    %2047 = vmatpush1.msra.mxu0 0.0
    %2048 = vmatprep.subr.mxu0 0.0
    %2049 = vmatpush1.msra.mxu0 0.0
    %2050 = vmatprep.subr.mxu0 0.0
    %2051 = vmatpush1.msra.mxu0 0.0
    %2052 = vmatprep.subr.mxu0 0.0
    %2053 = vmatpush1.msra.mxu0 0.0
    %2054 = vmatprep.subr.mxu0 0.0
    %2055 = vmatpush1.msra.mxu0 0.0
    %2056 = vmatprep.subr.mxu0 0.0
    %2057 = vmatpush1.msra.mxu0 0.0
    %2058 = vmatprep.subr.mxu0 0.0
    %2059 = vmatpush1.msra.mxu0 0.0
    %2060 = vmatprep.subr.mxu0 0.0
    %2061 = vmatpush1.msra.mxu0 0.0
    %2062 = vmatprep.subr.mxu0 0.0
    %2063 = vmatpush1.msra.mxu0 0.0
    %2064 = vmatprep.subr.mxu0 0.0
    %2065 = vmatpush1.msra.mxu0 0.0
    %2066 = vmatprep.subr.mxu0 0.0
    %2067 = vmatpush1.msra.mxu0 0.0
    %2068 = vmatprep.subr.mxu0 0.0
    %2069 = vmatpush1.msra.mxu0 0.0
    %2070 = vmatprep.subr.mxu0 0.0
    %2071 = vmatpush1.msra.mxu0 0.0
    %2072 = vmatprep.subr.mxu0 0.0
    %2073 = vmatpush1.msra.mxu0 0.0
    %2074 = vmatprep.subr.mxu0 0.0
    %2075 = vmatpush1.msra.mxu0 0.0
    %2076 = vmatprep.subr.mxu0 0.0
    %2077 = vmatpush1.msra.mxu0 0.0
    %2078 = vmatprep.subr.mxu0 0.0
    %2079 = vmatpush1.msra.mxu0 0.0
    %2080 = vmatprep.subr.mxu0 0.0
    %2081 = vmatpush1.msra.mxu0 0.0
    %2082 = vmatprep.subr.mxu0 0.0
    %2083 = vmatpush1.msra.mxu0 0.0
    %2084 = vmatprep.subr.mxu0 0.0
    %2085 = vmatpush1.msra.mxu0 0.0
    %2086 = vmatprep.subr.mxu0 0.0
    %2087 = vmatpush1.msra.mxu0 0.0
    %2088 = vmatprep.subr.mxu0 0.0
    %2089 = vmatpush1.msra.mxu0 0.0
    %2090 = vmatprep.mubr.f32.mxu0 0.0
    %2091 = vmatmul.mubr.f32.gmra.mrb[0].mxu0 %v2015
    %v2092 = vpop.f32.mrb[0].mxu0
    %v2093 = vadd.f32 0.0, %v2092
    %v2094 = vpop.f32.mrb[0].mxu0
    %v2095 = vadd.f32 0.0, %v2094
    %2096 = vmatprep.mubr.f32.mxu0 0.0
    %2097 = vmatmul.mubr.f32.gmra.mrb[0].mxu0 %v2018
    %v2098 = vpop.f32.mrb[0].mxu0
    %v2099 = vadd.f32 0.0, %v2098
    %v2100 = vpop.f32.mrb[0].mxu0
    %v2101 = vadd.f32 0.0, %v2100
    %2102 = vmatprep.mubr.f32.mxu0 0.0
    %2103 = vmatmul.mubr.f32.gmra.mrb[0].mxu0 %v2021
    %v2104 = vpop.f32.mrb[0].mxu0
    %v2105 = vadd.f32 0.0, %v2104
    %v2106 = vpop.f32.mrb[0].mxu0
    %v2107 = vadd.f32 0.0, %v2106
    %2108 = vmatprep.mubr.f32.mxu0 0.0
    %2109 = vmatmul.mubr.f32.gmra.mrb[0].mxu0 %v2024
    %v2110 = vpop.f32.mrb[0].mxu0
    %v2111 = vadd.f32 0.0, %v2110
    %v2112 = vpop.f32.mrb[0].mxu0
    %v2113 = vadd.f32 0.0, %v2112
    %2114 = vdwg.mxu0
    %v2115 = vadd.f32 %v1633, %v2093
    %v2116 = vadd.f32 %v1634, %v2095
    %v2117 = vadd.f32 %v1635, %v2099
    %v2118 = vadd.f32 %v1636, %v2101
    %v2119 = vadd.f32 %v1637, %v2105
    %v2120 = vadd.f32 %v1638, %v2107
    %v2121 = vadd.f32 %v1639, %v2111
    %v2122 = vadd.f32 %v1640, %v2113
    %v2123 = vmax.f32 %v2115, 0.0
    %v2124 = vmax.f32 %v2116, 0.0
    %v2125 = vmax.f32 %v2117, 0.0
    %v2126 = vmax.f32 %v2118, 0.0
    %v2127 = vmax.f32 %v2119, 0.0
    %v2128 = vmax.f32 %v2120, 0.0
    %v2129 = vmax.f32 %v2121, 0.0
    %v2130 = vmax.f32 %v2122, 0.0
    %v2131 = vld [vmem:[%s4] sm:$0xff]
    %v2132 = vld [vmem:[%s4 + $0x8] sm:$0xff]
    %v2133 = vld [vmem:[%s4 + $0x10] sm:$0xff]
    %v2134 = vld [vmem:[%s4 + $0x18] sm:$0xff]
    %vm2135 = vcmask 261120
    %v2137 = vsel %vm2135, %v2131, 0
    %v2140 = vsel %vm2135, %v2132, 0
    %v2143 = vsel %vm2135, %v2133, 0
    %v2146 = vsel %vm2135, %v2134, 0
    %2148 = vmatprep.subr.mxu0 %v2124
    %2149 = vmatpush1.msra.mxu0 %v2123
    %2150 = vmatprep.subr.mxu0 %v2126
    %2151 = vmatpush1.msra.mxu0 %v2125
    %2152 = vmatprep.subr.mxu0 %v2128
    %2153 = vmatpush1.msra.mxu0 %v2127
    %2154 = vmatprep.subr.mxu0 %v2130
    %2155 = vmatpush1.msra.mxu0 %v2129
    %2156 = vmatprep.subr.mxu0 0.0
    %2157 = vmatpush1.msra.mxu0 0.0
    %2158 = vmatprep.subr.mxu0 0.0
    %2159 = vmatpush1.msra.mxu0 0.0
    %2160 = vmatprep.subr.mxu0 0.0
    %2161 = vmatpush1.msra.mxu0 0.0
    %2162 = vmatprep.subr.mxu0 0.0
    %2163 = vmatpush1.msra.mxu0 0.0
    %2164 = vmatprep.subr.mxu0 0.0
    %2165 = vmatpush1.msra.mxu0 0.0
    %2166 = vmatprep.subr.mxu0 0.0
    %2167 = vmatpush1.msra.mxu0 0.0
    %2168 = vmatprep.subr.mxu0 0.0
    %2169 = vmatpush1.msra.mxu0 0.0
    %2170 = vmatprep.subr.mxu0 0.0
    %2171 = vmatpush1.msra.mxu0 0.0
    %2172 = vmatprep.subr.mxu0 0.0
    %2173 = vmatpush1.msra.mxu0 0.0
    %2174 = vmatprep.subr.mxu0 0.0
    %2175 = vmatpush1.msra.mxu0 0.0
    %2176 = vmatprep.subr.mxu0 0.0
    %2177 = vmatpush1.msra.mxu0 0.0
    %2178 = vmatprep.subr.mxu0 0.0
    %2179 = vmatpush1.msra.mxu0 0.0
    %2180 = vmatprep.subr.mxu0 0.0
    %2181 = vmatpush1.msra.mxu0 0.0
    %2182 = vmatprep.subr.mxu0 0.0
    %2183 = vmatpush1.msra.mxu0 0.0
    %2184 = vmatprep.subr.mxu0 0.0
    %2185 = vmatpush1.msra.mxu0 0.0
    %2186 = vmatprep.subr.mxu0 0.0
    %2187 = vmatpush1.msra.mxu0 0.0
    %2188 = vmatprep.subr.mxu0 0.0
    %2189 = vmatpush1.msra.mxu0 0.0
    %2190 = vmatprep.subr.mxu0 0.0
    %2191 = vmatpush1.msra.mxu0 0.0
    %2192 = vmatprep.subr.mxu0 0.0
    %2193 = vmatpush1.msra.mxu0 0.0
    %2194 = vmatprep.subr.mxu0 0.0
    %2195 = vmatpush1.msra.mxu0 0.0
    %2196 = vmatprep.subr.mxu0 0.0
    %2197 = vmatpush1.msra.mxu0 0.0
    %2198 = vmatprep.subr.mxu0 0.0
    %2199 = vmatpush1.msra.mxu0 0.0
    %2200 = vmatprep.subr.mxu0 0.0
    %2201 = vmatpush1.msra.mxu0 0.0
    %2202 = vmatprep.subr.mxu0 0.0
    %2203 = vmatpush1.msra.mxu0 0.0
    %2204 = vmatprep.subr.mxu0 0.0
    %2205 = vmatpush1.msra.mxu0 0.0
    %2206 = vmatprep.subr.mxu0 0.0
    %2207 = vmatpush1.msra.mxu0 0.0
    %2208 = vmatprep.subr.mxu0 0.0
    %2209 = vmatpush1.msra.mxu0 0.0
    %2210 = vmatprep.subr.mxu0 0.0
    %2211 = vmatpush1.msra.mxu0 0.0
    %2212 = vmatprep.mubr.f32.mxu0 0.0
    %2213 = vmatmul.mubr.f32.gmra.mrb[0].mxu0 %v2137
    %v2214 = vpop.f32.mrb[0].mxu0
    %v2215 = vadd.f32 0.0, %v2214
    %v2216 = vpop.f32.mrb[0].mxu0
    %v2217 = vadd.f32 0.0, %v2216
    %2218 = vmatprep.mubr.f32.mxu0 0.0
    %2219 = vmatmul.mubr.f32.gmra.mrb[0].mxu0 %v2140
    %v2220 = vpop.f32.mrb[0].mxu0
    %v2221 = vadd.f32 0.0, %v2220
    %v2222 = vpop.f32.mrb[0].mxu0
    %v2223 = vadd.f32 0.0, %v2222
    %2224 = vmatprep.mubr.f32.mxu0 0.0
    %2225 = vmatmul.mubr.f32.gmra.mrb[0].mxu0 %v2143
    %v2226 = vpop.f32.mrb[0].mxu0
    %v2227 = vadd.f32 0.0, %v2226
    %v2228 = vpop.f32.mrb[0].mxu0
    %v2229 = vadd.f32 0.0, %v2228
    %2230 = vmatprep.mubr.f32.mxu0 0.0
    %2231 = vmatmul.mubr.f32.gmra.mrb[0].mxu0 %v2146
    %v2232 = vpop.f32.mrb[0].mxu0
    %v2233 = vadd.f32 0.0, %v2232
    %v2234 = vpop.f32.mrb[0].mxu0
    %v2235 = vadd.f32 0.0, %v2234
    %2236 = vdwg.mxu0
    %v2237 = vmax.f32 %v2215, 0.0
    %v2238 = vmax.f32 %v2217, 0.0
    %v2239 = vmax.f32 %v2221, 0.0
    %v2240 = vmax.f32 %v2223, 0.0
    %v2241 = vmax.f32 %v2227, 0.0
    %v2242 = vmax.f32 %v2229, 0.0
    %v2243 = vmax.f32 %v2233, 0.0
    %v2244 = vmax.f32 %v2235, 0.0
    %v2245 = vld [vmem:[%s5] sm:$0x1]
    %v2247 = vsel %vm2135, %v2245, 0
    %2249 = vmatprep.subr.mxu0 %v2238
    %2250 = vmatpush1.msra.mxu0 %v2237
    %2251 = vmatprep.subr.mxu0 %v2240
    %2252 = vmatpush1.msra.mxu0 %v2239
    %2253 = vmatprep.subr.mxu0 %v2242
    %2254 = vmatpush1.msra.mxu0 %v2241
    %2255 = vmatprep.subr.mxu0 %v2244
    %2256 = vmatpush1.msra.mxu0 %v2243
    %2257 = vmatprep.subr.mxu0 0.0
    %2258 = vmatpush1.msra.mxu0 0.0
    %2259 = vmatprep.subr.mxu0 0.0
    %2260 = vmatpush1.msra.mxu0 0.0
    %2261 = vmatprep.subr.mxu0 0.0
    %2262 = vmatpush1.msra.mxu0 0.0
    %2263 = vmatprep.subr.mxu0 0.0
    %2264 = vmatpush1.msra.mxu0 0.0
    %2265 = vmatprep.subr.mxu0 0.0
    %2266 = vmatpush1.msra.mxu0 0.0
    %2267 = vmatprep.subr.mxu0 0.0
    %2268 = vmatpush1.msra.mxu0 0.0
    %2269 = vmatprep.subr.mxu0 0.0
    %2270 = vmatpush1.msra.mxu0 0.0
    %2271 = vmatprep.subr.mxu0 0.0
    %2272 = vmatpush1.msra.mxu0 0.0
    %2273 = vmatprep.subr.mxu0 0.0
    %2274 = vmatpush1.msra.mxu0 0.0
    %2275 = vmatprep.subr.mxu0 0.0
    %2276 = vmatpush1.msra.mxu0 0.0
    %2277 = vmatprep.subr.mxu0 0.0
    %2278 = vmatpush1.msra.mxu0 0.0
    %2279 = vmatprep.subr.mxu0 0.0
    %2280 = vmatpush1.msra.mxu0 0.0
    %2281 = vmatprep.subr.mxu0 0.0
    %2282 = vmatpush1.msra.mxu0 0.0
    %2283 = vmatprep.subr.mxu0 0.0
    %2284 = vmatpush1.msra.mxu0 0.0
    %2285 = vmatprep.subr.mxu0 0.0
    %2286 = vmatpush1.msra.mxu0 0.0
    %2287 = vmatprep.subr.mxu0 0.0
    %2288 = vmatpush1.msra.mxu0 0.0
    %2289 = vmatprep.subr.mxu0 0.0
    %2290 = vmatpush1.msra.mxu0 0.0
    %2291 = vmatprep.subr.mxu0 0.0
    %2292 = vmatpush1.msra.mxu0 0.0
    %2293 = vmatprep.subr.mxu0 0.0
    %2294 = vmatpush1.msra.mxu0 0.0
    %2295 = vmatprep.subr.mxu0 0.0
    %2296 = vmatpush1.msra.mxu0 0.0
    %2297 = vmatprep.subr.mxu0 0.0
    %2298 = vmatpush1.msra.mxu0 0.0
    %2299 = vmatprep.subr.mxu0 0.0
    %2300 = vmatpush1.msra.mxu0 0.0
    %2301 = vmatprep.subr.mxu0 0.0
    %2302 = vmatpush1.msra.mxu0 0.0
    %2303 = vmatprep.subr.mxu0 0.0
    %2304 = vmatpush1.msra.mxu0 0.0
    %2305 = vmatprep.subr.mxu0 0.0
    %2306 = vmatpush1.msra.mxu0 0.0
    %2307 = vmatprep.subr.mxu0 0.0
    %2308 = vmatpush1.msra.mxu0 0.0
    %2309 = vmatprep.subr.mxu0 0.0
    %2310 = vmatpush1.msra.mxu0 0.0
    %2311 = vmatprep.subr.mxu0 0.0
    %2312 = vmatpush1.msra.mxu0 0.0
    %2313 = vmatprep.mubr.f32.mxu0 0.0
    %2314 = vmatmul.mubr.f32.gmra.mrb[0].mxu0 %v2247
    %v2315 = vpop.f32.mrb[0].mxu0
    %v2316 = vadd.f32 0.0, %v2315
    %v2317 = vpop.f32.mrb[0].mxu0
    %v2318 = vadd.f32 0.0, %v2317
    %2319 = vdwg.mxu0
    %s2320 = sld [smem:[#allocation2]]
    %v2321 = vstv %s2320
    %v2322 = vmul.f32 %v2316, %v2321
    %v2323 = vmul.f32 %v2318, %v2321
    %s2324 = sld [smem:[#allocation2 + $0x1]]
    %v2325 = vstv %s2324
    %v2326 = vadd.f32 %v2322, %v2325
    %v2327 = vadd.f32 %v2323, %v2325
    %v2330 = vcombine.low %v2326, %v2327
    %v2332 = vunpack.c.l.s4 1966171168
    %v2333 = vunpack.c.0.s8 %v2332
    %v2334 = vlaneseq
    %v2335 = vshrl.u32 %v2334, 7
    %v2336 = vsub.s32 %v2333, %v2335
    %v2337 = vrot.slane %v2330, %v2336
    %v2339 = vunpack.c.l.s4 1966171168
    %v2340 = vunpack.c.0.s8 %v2339
    %v2341 = vlaneseq
    %v2342 = vshrl.u32 %v2341, 7
    %v2343 = vsub.s32 %v2340, %v2342
    %v2344 = vrot.slane %v2337, %v2343
    %v2346 = vlaneseq
    %vm2347 = vcmp.ge.s32.totalorder %v2346, 0
    %vm2348 = vcmp.lt.s32.totalorder %v2346, 256
    %vm2349 = vmand %vm2347, %vm2348
    %2350 = vst.msk [vmem:[#allocation5] sm:$0x3] %vm2349, %v2344
    // Predicated region
    $region34: #{tvamgsrn_forward.1} parent=1 // pred_check
      _
    $region35: #{tvamgsrn_forward.1} parent=1 // pred_check_branch
      %2352 = sbr.rel (0) target = $region37
    $region36: #{tvamgsrn_forward.1} parent=1 // pred_region
      %s2354 = ssub.s32 32, 32
      %2355 = vsyncadd [#allocation3], %s2354
      %s2357 = sshll.u32 [#allocation5], 4
      %s2358 = int_to_ptr.vmem [resolvable:$true] %s2357
      %2360 = dma.vmem_to_hbm [thread:$0]  %s2358, 32, %s7, [#allocation3]
    $region37: #{tvamgsrn_forward.1} parent=1 // pred_fallthru
      _
    // Predicated region
    $region38: #{tvamgsrn_forward.1} parent=1 // pred_check
      _
    $region39: #{tvamgsrn_forward.1} parent=1 // pred_check_branch
      %2362 = sbr.rel (0) target = $region41
    $region40: #{tvamgsrn_forward.1} parent=1 // pred_region
      %2363 = dma.done [#allocation3], 32
    $region41: #{tvamgsrn_forward.1} parent=1 // pred_fallthru
      _
    %2364 = vsyncpa [#allocation3], 1
    %2365 = vsyncpa [#allocation4], 1

</llo_original>
